<compile_context>
chip_gen: v5e
topology: v5e:2x2
jax: 0.10.0
libtpu: 0.0.40
codegen_flags: <defaults>
</compile_context>

<pallas_src>
import functools
import math

import jax
import jax.numpy as jnp
from jax.experimental import pallas as pl
from jax.experimental.pallas import tpu as pltpu


# ----------------------------------------------------------------------------
# Kernel A: LayerNorm + feat_2d projection, emitting the triangle bias directly
#           in (B, H, N, M) layout (lane-dense rows of length M, stored bf16).
# ----------------------------------------------------------------------------
def _layernorm_bias_kernel(x_ref, g_ref, b_ref, w2dT_ref, nb_ref):
    x = x_ref[0]                                           # (RA, M, C) f32
    ra = x.shape[0]

    mu = jnp.mean(x, axis=-1, keepdims=True)
    xc = x - mu
    var = jnp.mean(xc * xc, axis=-1, keepdims=True)
    y = (xc * jax.lax.rsqrt(var + 1e-5) * g_ref[...] + b_ref[...]).astype(jnp.bfloat16)

    w2dT = w2dT_ref[...]                                   # (H, C) bf16
    for r in range(ra):                                    # static unroll; tiny matmuls
        # (H, C) x (M, C) contracted on C -> (H, M): lane-dense along M.
        nb_r = jax.lax.dot_general(w2dT, y[r], (((1,), (1,)), ((), ())),
                                   preferred_element_type=jnp.float32)
        nb_ref[0, :, r, :] = nb_r.astype(nb_ref.dtype)


# ----------------------------------------------------------------------------
# Kernel B: per-(batch, row-block) gated multi-head attention + fused output
#           projection + residual.  LayerNorm is recomputed here (no xn in HBM).
# ----------------------------------------------------------------------------
def _triangle_attn_kernel(xraw_ref, mask_ref, nb_ref, g_ref, b_ref,
                          wqkvg_ref, gb_ref, wo_ref, ob_ref, out_ref, *, num_head):
    x = xraw_ref[0]                                        # (R, M, C) f32 raw row block
    R, M, C = x.shape
    H = num_head
    D = C // H

    # LayerNorm (recomputed in-kernel; xn never round-trips through HBM).
    mu = jnp.mean(x, axis=-1, keepdims=True)
    xc = x - mu
    var = jnp.mean(xc * xc, axis=-1, keepdims=True)
    y = xc * jax.lax.rsqrt(var + 1e-5) * g_ref[...] + b_ref[...]

    # One fused, lane-dense [Q|K|V|G] projection on the MXU (bf16 in, f32 accum).
    # 1/sqrt(D) is already folded into the Q columns of the fused weight.
    y2 = y.reshape(R * M, C).astype(jnp.bfloat16)
    proj = jnp.dot(y2, wqkvg_ref[...], preferred_element_type=jnp.float32)   # (R*M, 4C) f32

    gate = jax.nn.sigmoid(proj[:, 3 * C:4 * C] + gb_ref[...])                # (R*M, C) f32
    mb = 1e9 * (mask_ref[0] - 1.0)                                           # (R, 1, M) f32

    pv_heads = []
    for h in range(H):                                                       # static unroll
        qh = proj[:, 0 * C + h * D:0 * C + (h + 1) * D].reshape(R, M, D).astype(jnp.bfloat16)
        kh = proj[:, 1 * C + h * D:1 * C + (h + 1) * D].reshape(R, M, D).astype(jnp.bfloat16)
        vh = proj[:, 2 * C + h * D:2 * C + (h + 1) * D].reshape(R, M, D).astype(jnp.bfloat16)

        logits = jnp.einsum('rqd,rkd->rqk', qh, kh,
                            preferred_element_type=jnp.float32)              # (R, M, M) f32
        logits = logits + mb + nb_ref[0, h].astype(jnp.float32)              # mask + triangle bias

        # softmax in f32; normalization via the (otherwise idle) EUP approx reciprocal.
        lmax = jnp.max(logits, axis=-1, keepdims=True)
        p = jnp.exp(logits - lmax)
        probs = p * pl.reciprocal(jnp.sum(p, axis=-1, keepdims=True), approx=True)

        pv_heads.append(jnp.einsum('rqk,rkd->rqd', probs.astype(jnp.bfloat16), vh,
                                   preferred_element_type=jnp.float32))      # (R, M, D) f32

    # Fused output projection: gate, stack heads along the lane axis, single (C,C) matmul.
    pv = jnp.concatenate(pv_heads, axis=-1).reshape(R * M, C)                # (R*M, C) f32
    wa = (pv * gate).astype(jnp.bfloat16)
    o = jnp.dot(wa, wo_ref[...], preferred_element_type=jnp.float32)         # (R*M, C) f32

    # residual + fused output bias (bias_dropout_add at inference), all in f32.
    out_ref[0] = x + o.reshape(R, M, C) + ob_ref[...]


# ----------------------------------------------------------------------------
# Wrapper
# ----------------------------------------------------------------------------
def _pick_row_block(n, h, m, budget_bytes=8 * 1024 * 1024):
    """Largest R <= 8 dividing n whose (R, H, M, M) f32 logits stay under the budget."""
    cap = max(1, budget_bytes // (h * m * m * 4))
    r = max(1, min(8, cap, n))
    while n % r:
        r -= 1
    return r


def triangle_attention_ffb(pair_act_raw, pair_mask, params, *,
                           num_head, orientation='per_row'):
    B, N, M, C = pair_act_raw.shape
    assert N == M, "triangle attention requires a square pair matrix"
    H = num_head
    D = C // H

    x_in = pair_act_raw
    m_in = pair_mask
    if orientation == 'per_column':
        x_in = jnp.swapaxes(x_in, -2, -3)
        m_in = jnp.swapaxes(m_in, -1, -2)

    g2 = params['ln_g'].reshape(1, C).astype(jnp.float32)
    b2 = params['ln_b'].reshape(1, C).astype(jnp.float32)
    w2dT = jnp.transpose(params['w2d']).astype(jnp.bfloat16)          # (H, C)

    # ---------------- Kernel A: triangle bias in (B, H, N, M) bf16 ----------------
    RA = 8 if N % 8 == 0 else N
    nb = pl.pallas_call(
        _layernorm_bias_kernel,
        grid=(B, N // RA),
        in_specs=[
            pl.BlockSpec((1, RA, M, C), lambda b, r: (b, r, 0, 0)),
            pl.BlockSpec((1, C), lambda b, r: (0, 0)),
            pl.BlockSpec((1, C), lambda b, r: (0, 0)),
            pl.BlockSpec((H, C), lambda b, r: (0, 0)),
        ],
        out_specs=pl.BlockSpec((1, H, RA, M), lambda b, r: (b, 0, r, 0)),
        out_shape=jax.ShapeDtypeStruct((B, H, N, M), jnp.bfloat16),
        compiler_params=pltpu.CompilerParams(
            dimension_semantics=("parallel", "parallel"),
            vmem_limit_bytes=64 * 1024 * 1024),
    )(x_in, g2, b2, w2dT)

    # ---------------- host-side weight fusion (one-time, free) ----------------
    scale = D ** (-0.5)
    wqkvg = jnp.concatenate(
        [(params['wq'] * scale).reshape(C, C),     # scale folded into Wq
         params['wk'].reshape(C, C),
         params['wv'].reshape(C, C),
         params['wg'].reshape(C, C)], axis=-1).astype(jnp.bfloat16)   # (C, 4C)
    gb = params['gb'].reshape(1, C).astype(jnp.float32)
    wo = params['wo'].reshape(C, C).astype(jnp.bfloat16)              # (H*D, C)
    ob = params['out_bias'].reshape(1, C).astype(jnp.float32)

    mask4 = m_in.reshape(B, N, 1, M).astype(jnp.float32)

    # ---------------- Kernel B: attention over row blocks ----------------
    RB = _pick_row_block(N, H, M)
    kernel = functools.partial(_triangle_attn_kernel, num_head=H)
    # TODO(synk): for very large N_res a flash-style key-tiled variant (and Buffered(1)
    # single-buffering of the invariant bias/weight inputs) is needed to fit v7x VMEM.
    out = pl.pallas_call(
        kernel,
        grid=(B, N // RB),
        in_specs=[
            pl.BlockSpec((1, RB, M, C), lambda b, r: (b, r, 0, 0)),   # raw rows (LN + residual)
            pl.BlockSpec((1, RB, 1, M), lambda b, r: (b, r, 0, 0)),   # mask rows
            pl.BlockSpec((1, H, N, M), lambda b, r: (b, 0, 0, 0)),    # triangle bias (per batch)
            pl.BlockSpec((1, C), lambda b, r: (0, 0)),                # LN gamma
            pl.BlockSpec((1, C), lambda b, r: (0, 0)),                # LN beta
            pl.BlockSpec((C, 4 * C), lambda b, r: (0, 0)),            # fused Wq|Wk|Wv|Wg (bf16)
            pl.BlockSpec((1, C), lambda b, r: (0, 0)),                # gating bias
            pl.BlockSpec((C, C), lambda b, r: (0, 0)),                # Wo flattened (bf16)
            pl.BlockSpec((1, C), lambda b, r: (0, 0)),                # fused out bias
        ],
        out_specs=pl.BlockSpec((1, RB, M, C), lambda b, r: (b, r, 0, 0)),
        out_shape=jax.ShapeDtypeStruct((B, N, M, C), jnp.float32),
        compiler_params=pltpu.CompilerParams(
            dimension_semantics=("parallel", "parallel"),
            vmem_limit_bytes=64 * 1024 * 1024),
    )(x_in, mask4, nb, g2, b2, wqkvg, gb, wo, ob)

    if orientation == 'per_column':
        out = jnp.swapaxes(out, -2, -3)
    # NOTE: inference_subbatch is a memory-chunking identity; it is subsumed by the grid tiling.
    # TODO(synk): training-time shared row/column dropout of bias_dropout_add is not implemented
    # (inference path only, matching is_training=False).
    return out


# ----------------------------------------------------------------------------
# Deterministic parameter init (shapes implied by the module's __init__)
# ----------------------------------------------------------------------------
def init_params(key, C, H):
    D = C // H
    ks = jax.random.split(key, 10)
    std = 1.0 / math.sqrt(C)
    p = dict(
        ln_g=1.0 + 0.1 * jax.random.normal(ks[0], (C,)),
        ln_b=0.1 * jax.random.normal(ks[1], (C,)),
        w2d=std * jax.random.normal(ks[2], (C, H)),            # feat_2d_weights
        wq=std * jax.random.normal(ks[3], (C, H, D)),
        wk=std * jax.random.normal(ks[4], (C, H, D)),
        wv=std * jax.random.normal(ks[5], (C, H, D)),
        wg=std * jax.random.normal(ks[6], (C, H, D)),
        gb=jnp.ones((H, D)) + 0.1 * jax.random.normal(ks[7], (H, D)),
        wo=std * jax.random.normal(ks[8], (H, D, C)),
        out_bias=0.1 * jax.random.normal(ks[9], (C,)),          # fused o_linear bias
    )
    return jax.tree_util.tree_map(lambda a: a.astype(jnp.float32), p)


# ----------------------------------------------------------------------------
# Pure-JAX f32 reference (mirrors the PyTorch / AF2 semantics)
# ----------------------------------------------------------------------------
def reference_forward(pair_act_raw, pair_mask, params, *, num_head, orientation='per_row'):
    C = pair_act_raw.shape[-1]
    H = num_head
    D = C // H
    x, m = pair_act_raw, pair_mask
    if orientation == 'per_column':
        x = jnp.swapaxes(x, -2, -3)
        m = jnp.swapaxes(m, -1, -2)
    mu = jnp.mean(x, -1, keepdims=True)
    var = jnp.mean((x - mu) ** 2, -1, keepdims=True)
    xn = (x - mu) / jnp.sqrt(var + 1e-5) * params['ln_g'] + params['ln_b']
    nb = jnp.einsum('bqkc,ch->bhqk', xn, params['w2d'])
    scale = D ** (-0.5)
    q = jnp.einsum('brqc,chd->brqhd', xn, params['wq']) * scale
    k = jnp.einsum('brkc,chd->brkhd', xn, params['wk'])
    v = jnp.einsum('brkc,chd->brkhd', xn, params['wv'])
    bias = (1e9 * (m - 1.0))[:, :, None, None, :]
    logits = jnp.einsum('brqhd,brkhd->brhqk', q, k) + bias + nb[:, None]
    probs = jax.nn.softmax(logits, axis=-1)
    wa = jnp.einsum('brhqk,brkhd->brqhd', probs, v)
    gate = jax.nn.sigmoid(jnp.einsum('brqc,chd->brqhd', xn, params['wg']) + params['gb'])
    out = jnp.einsum('brqhd,hdc->brqc', wa * gate, params['wo'])
    if orientation == 'per_column':
        out = jnp.swapaxes(out, -2, -3)
    return pair_act_raw + out + params['out_bias']


if __name__ == "__main__":
    B, N, C, H = 2, 16, 32, 4
    key = jax.random.PRNGKey(0)
    k_act, k_mask, k_par = jax.random.split(key, 3)
    pair_act_raw = jax.random.normal(k_act, (B, N, N, C), jnp.float32)
    pair_mask = (jax.random.uniform(k_mask, (B, N, N)) > 0.15).astype(jnp.float32)
    params = init_params(k_par, C, H)

    ok = True
    for orientation in ('per_row', 'per_column'):
        out = triangle_attention_ffb(pair_act_raw, pair_mask, params,
                                     num_head=H, orientation=orientation)
        out = jax.block_until_ready(out)
        ref = reference_forward(pair_act_raw, pair_mask, params,
                                num_head=H, orientation=orientation)
        err = float(jnp.max(jnp.abs(out - ref)))
        if not (err < 5e-2):   # bf16 MXU inputs with f32 accumulation vs f32 reference
            ok = False
            print(f"orientation={orientation} max_abs_err={err}")
    if ok:
        print("KERNEL_OK")
</pallas_src>

<mosaic_0001>
module attributes {stable_mosaic.version = 11 : i64} {
  func.func @_layernorm_bias_kernel(%arg0: i32, %arg1: i32, %arg2: memref<1x8x16x32xf32, #tpu.memory_space<vmem>>, %arg3: memref<1x32xf32, #tpu.memory_space<vmem>>, %arg4: memref<1x32xf32, #tpu.memory_space<vmem>>, %arg5: memref<4x32xbf16, #tpu.memory_space<vmem>>, %arg6: memref<1x4x8x16xbf16, #tpu.memory_space<vmem>>) attributes {dimension_semantics = [#tpu.dimension_semantics<parallel>, #tpu.dimension_semantics<parallel>], iteration_bounds = array<i64: 2, 2>, scalar_prefetch = 0 : i64, scratch_operands = 0 : i64, tpu.core_type = #tpu.core_type<tc>, window_params = [{transform_indices = @transform_0, window_bounds = array<i64: 1, 8, 16, 32>}, {pipeline_mode = #tpu.pipeline_mode<synchronous>, transform_indices = @transform_1, window_bounds = array<i64: 1, 32>}, {pipeline_mode = #tpu.pipeline_mode<synchronous>, transform_indices = @transform_2, window_bounds = array<i64: 1, 32>}, {pipeline_mode = #tpu.pipeline_mode<synchronous>, transform_indices = @transform_3, window_bounds = array<i64: 4, 32>}, {transform_indices = @transform_4, window_bounds = array<i64: 1, 4, 8, 16>}]} {
    %c0 = arith.constant 0 : index
    %c0_0 = arith.constant 0 : index
    %c0_1 = arith.constant 0 : index
    %c0_2 = arith.constant 0 : index
    %0 = vector.load %arg2[%c0, %c0_0, %c0_1, %c0_2] : memref<1x8x16x32xf32, #tpu.memory_space<vmem>>, vector<1x8x16x32xf32>
    %1 = vector.shape_cast %0 : vector<1x8x16x32xf32> to vector<8x16x32xf32>
    %cst = arith.constant dense<0.000000e+00> : vector<8x16xf32>
    %2 = vector.multi_reduction <add>, %1, %cst [2] : vector<8x16x32xf32> to vector<8x16xf32>
    %3 = vector.shape_cast %2 : vector<8x16xf32> to vector<8x16x1xf32>
    %cst_3 = arith.constant 3.200000e+01 : f32
    %4 = vector.broadcast %cst_3 : f32 to vector<8x16x1xf32>
    %5 = arith.divf %3, %4 : vector<8x16x1xf32>
    %6 = vector.broadcast %5 : vector<8x16x1xf32> to vector<8x16x32xf32>
    %7 = arith.subf %1, %6 : vector<8x16x32xf32>
    %8 = arith.mulf %7, %7 : vector<8x16x32xf32>
    %cst_4 = arith.constant dense<0.000000e+00> : vector<8x16xf32>
    %9 = vector.multi_reduction <add>, %8, %cst_4 [2] : vector<8x16x32xf32> to vector<8x16xf32>
    %10 = vector.shape_cast %9 : vector<8x16xf32> to vector<8x16x1xf32>
    %cst_5 = arith.constant 3.200000e+01 : f32
    %11 = vector.broadcast %cst_5 : f32 to vector<8x16x1xf32>
    %12 = arith.divf %10, %11 : vector<8x16x1xf32>
    %cst_6 = arith.constant 9.99999974E-6 : f32
    %13 = vector.broadcast %cst_6 : f32 to vector<8x16x1xf32>
    %14 = arith.addf %12, %13 : vector<8x16x1xf32>
    %15 = math.rsqrt %14 : vector<8x16x1xf32>
    %16 = vector.broadcast %15 : vector<8x16x1xf32> to vector<8x16x32xf32>
    %17 = arith.mulf %7, %16 : vector<8x16x32xf32>
    %c0_7 = arith.constant 0 : index
    %c0_8 = arith.constant 0 : index
    %18 = vector.load %arg3[%c0_7, %c0_8] : memref<1x32xf32, #tpu.memory_space<vmem>>, vector<1x32xf32>
    %19 = vector.shape_cast %18 : vector<1x32xf32> to vector<1x1x32xf32>
    %20 = vector.broadcast %19 : vector<1x1x32xf32> to vector<8x16x32xf32>
    %21 = arith.mulf %17, %20 : vector<8x16x32xf32>
    %c0_9 = arith.constant 0 : index
    %c0_10 = arith.constant 0 : index
    %22 = vector.load %arg4[%c0_9, %c0_10] : memref<1x32xf32, #tpu.memory_space<vmem>>, vector<1x32xf32>
    %23 = vector.shape_cast %22 : vector<1x32xf32> to vector<1x1x32xf32>
    %24 = vector.broadcast %23 : vector<1x1x32xf32> to vector<8x16x32xf32>
    %25 = arith.addf %21, %24 : vector<8x16x32xf32>
    %26 = arith.truncf %25 : vector<8x16x32xf32> to vector<8x16x32xbf16>
    %c0_11 = arith.constant 0 : index
    %c0_12 = arith.constant 0 : index
    %27 = vector.load %arg5[%c0_11, %c0_12] : memref<4x32xbf16, #tpu.memory_space<vmem>>, vector<4x32xbf16>
    %28 = vector.extract_strided_slice %26 {offsets = [0, 0, 0], sizes = [1, 16, 32], strides = [1, 1, 1]} : vector<8x16x32xbf16> to vector<1x16x32xbf16>
    %29 = vector.shape_cast %28 : vector<1x16x32xbf16> to vector<16x32xbf16>
    %cst_13 = arith.constant dense<0.000000e+00> : vector<4x16xf32>
    %30 = tpu.matmul %27, %29, %cst_13 {dimension_numbers = #tpu.dot_dimension_numbers<[1], [1], [0], [0], [0, 0, 1, 0], [], []>} : vector<4x32xbf16>, vector<16x32xbf16>, vector<4x16xf32> -> vector<4x16xf32>
    %31 = arith.truncf %30 : vector<4x16xf32> to vector<4x16xbf16>
    %c0_14 = arith.constant 0 : index
    %c0_15 = arith.constant 0 : index
    %c0_16 = arith.constant 0 : index
    %c0_17 = arith.constant 0 : index
    %32 = vector.load %arg6[%c0_14, %c0_15, %c0_16, %c0_17] : memref<1x4x8x16xbf16, #tpu.memory_space<vmem>>, vector<1x4x1x16xbf16>
    %33 = vector.shape_cast %32 : vector<1x4x1x16xbf16> to vector<4x16xbf16>
    %34 = vector.shape_cast %31 : vector<4x16xbf16> to vector<1x4x1x16xbf16>
    tpu.vector_store %arg6[%c0_14, %c0_15, %c0_16, %c0_17], %34 {strides = array<i32>} : memref<1x4x8x16xbf16, #tpu.memory_space<vmem>>, vector<1x4x1x16xbf16>,
    %35 = vector.extract_strided_slice %26 {offsets = [1, 0, 0], sizes = [1, 16, 32], strides = [1, 1, 1]} : vector<8x16x32xbf16> to vector<1x16x32xbf16>
    %36 = vector.shape_cast %35 : vector<1x16x32xbf16> to vector<16x32xbf16>
    %cst_18 = arith.constant dense<0.000000e+00> : vector<4x16xf32>
    %37 = tpu.matmul %27, %36, %cst_18 {dimension_numbers = #tpu.dot_dimension_numbers<[1], [1], [0], [0], [0, 0, 1, 0], [], []>} : vector<4x32xbf16>, vector<16x32xbf16>, vector<4x16xf32> -> vector<4x16xf32>
    %38 = arith.truncf %37 : vector<4x16xf32> to vector<4x16xbf16>
    %c0_19 = arith.constant 0 : index
    %c0_20 = arith.constant 0 : index
    %c1 = arith.constant 1 : index
    %c0_21 = arith.constant 0 : index
    %39 = vector.load %arg6[%c0_19, %c0_20, %c1, %c0_21] : memref<1x4x8x16xbf16, #tpu.memory_space<vmem>>, vector<1x4x1x16xbf16>
    %40 = vector.shape_cast %39 : vector<1x4x1x16xbf16> to vector<4x16xbf16>
    %41 = vector.shape_cast %38 : vector<4x16xbf16> to vector<1x4x1x16xbf16>
    tpu.vector_store %arg6[%c0_19, %c0_20, %c1, %c0_21], %41 {strides = array<i32>} : memref<1x4x8x16xbf16, #tpu.memory_space<vmem>>, vector<1x4x1x16xbf16>,
    %42 = vector.extract_strided_slice %26 {offsets = [2, 0, 0], sizes = [1, 16, 32], strides = [1, 1, 1]} : vector<8x16x32xbf16> to vector<1x16x32xbf16>
    %43 = vector.shape_cast %42 : vector<1x16x32xbf16> to vector<16x32xbf16>
    %cst_22 = arith.constant dense<0.000000e+00> : vector<4x16xf32>
    %44 = tpu.matmul %27, %43, %cst_22 {dimension_numbers = #tpu.dot_dimension_numbers<[1], [1], [0], [0], [0, 0, 1, 0], [], []>} : vector<4x32xbf16>, vector<16x32xbf16>, vector<4x16xf32> -> vector<4x16xf32>
    %45 = arith.truncf %44 : vector<4x16xf32> to vector<4x16xbf16>
    %c0_23 = arith.constant 0 : index
    %c0_24 = arith.constant 0 : index
    %c2 = arith.constant 2 : index
    %c0_25 = arith.constant 0 : index
    %46 = vector.load %arg6[%c0_23, %c0_24, %c2, %c0_25] : memref<1x4x8x16xbf16, #tpu.memory_space<vmem>>, vector<1x4x1x16xbf16>
    %47 = vector.shape_cast %46 : vector<1x4x1x16xbf16> to vector<4x16xbf16>
    %48 = vector.shape_cast %45 : vector<4x16xbf16> to vector<1x4x1x16xbf16>
    tpu.vector_store %arg6[%c0_23, %c0_24, %c2, %c0_25], %48 {strides = array<i32>} : memref<1x4x8x16xbf16, #tpu.memory_space<vmem>>, vector<1x4x1x16xbf16>,
    %49 = vector.extract_strided_slice %26 {offsets = [3, 0, 0], sizes = [1, 16, 32], strides = [1, 1, 1]} : vector<8x16x32xbf16> to vector<1x16x32xbf16>
    %50 = vector.shape_cast %49 : vector<1x16x32xbf16> to vector<16x32xbf16>
    %cst_26 = arith.constant dense<0.000000e+00> : vector<4x16xf32>
    %51 = tpu.matmul %27, %50, %cst_26 {dimension_numbers = #tpu.dot_dimension_numbers<[1], [1], [0], [0], [0, 0, 1, 0], [], []>} : vector<4x32xbf16>, vector<16x32xbf16>, vector<4x16xf32> -> vector<4x16xf32>
    %52 = arith.truncf %51 : vector<4x16xf32> to vector<4x16xbf16>
    %c0_27 = arith.constant 0 : index
    %c0_28 = arith.constant 0 : index
    %c3 = arith.constant 3 : index
    %c0_29 = arith.constant 0 : index
    %53 = vector.load %arg6[%c0_27, %c0_28, %c3, %c0_29] : memref<1x4x8x16xbf16, #tpu.memory_space<vmem>>, vector<1x4x1x16xbf16>
    %54 = vector.shape_cast %53 : vector<1x4x1x16xbf16> to vector<4x16xbf16>
    %55 = vector.shape_cast %52 : vector<4x16xbf16> to vector<1x4x1x16xbf16>
    tpu.vector_store %arg6[%c0_27, %c0_28, %c3, %c0_29], %55 {strides = array<i32>} : memref<1x4x8x16xbf16, #tpu.memory_space<vmem>>, vector<1x4x1x16xbf16>,
    %56 = vector.extract_strided_slice %26 {offsets = [4, 0, 0], sizes = [1, 16, 32], strides = [1, 1, 1]} : vector<8x16x32xbf16> to vector<1x16x32xbf16>
    %57 = vector.shape_cast %56 : vector<1x16x32xbf16> to vector<16x32xbf16>
    %cst_30 = arith.constant dense<0.000000e+00> : vector<4x16xf32>
    %58 = tpu.matmul %27, %57, %cst_30 {dimension_numbers = #tpu.dot_dimension_numbers<[1], [1], [0], [0], [0, 0, 1, 0], [], []>} : vector<4x32xbf16>, vector<16x32xbf16>, vector<4x16xf32> -> vector<4x16xf32>
    %59 = arith.truncf %58 : vector<4x16xf32> to vector<4x16xbf16>
    %c0_31 = arith.constant 0 : index
    %c0_32 = arith.constant 0 : index
    %c4 = arith.constant 4 : index
    %c0_33 = arith.constant 0 : index
    %60 = vector.load %arg6[%c0_31, %c0_32, %c4, %c0_33] : memref<1x4x8x16xbf16, #tpu.memory_space<vmem>>, vector<1x4x1x16xbf16>
    %61 = vector.shape_cast %60 : vector<1x4x1x16xbf16> to vector<4x16xbf16>
    %62 = vector.shape_cast %59 : vector<4x16xbf16> to vector<1x4x1x16xbf16>
    tpu.vector_store %arg6[%c0_31, %c0_32, %c4, %c0_33], %62 {strides = array<i32>} : memref<1x4x8x16xbf16, #tpu.memory_space<vmem>>, vector<1x4x1x16xbf16>,
    %63 = vector.extract_strided_slice %26 {offsets = [5, 0, 0], sizes = [1, 16, 32], strides = [1, 1, 1]} : vector<8x16x32xbf16> to vector<1x16x32xbf16>
    %64 = vector.shape_cast %63 : vector<1x16x32xbf16> to vector<16x32xbf16>
    %cst_34 = arith.constant dense<0.000000e+00> : vector<4x16xf32>
    %65 = tpu.matmul %27, %64, %cst_34 {dimension_numbers = #tpu.dot_dimension_numbers<[1], [1], [0], [0], [0, 0, 1, 0], [], []>} : vector<4x32xbf16>, vector<16x32xbf16>, vector<4x16xf32> -> vector<4x16xf32>
    %66 = arith.truncf %65 : vector<4x16xf32> to vector<4x16xbf16>
    %c0_35 = arith.constant 0 : index
    %c0_36 = arith.constant 0 : index
    %c5 = arith.constant 5 : index
    %c0_37 = arith.constant 0 : index
    %67 = vector.load %arg6[%c0_35, %c0_36, %c5, %c0_37] : memref<1x4x8x16xbf16, #tpu.memory_space<vmem>>, vector<1x4x1x16xbf16>
    %68 = vector.shape_cast %67 : vector<1x4x1x16xbf16> to vector<4x16xbf16>
    %69 = vector.shape_cast %66 : vector<4x16xbf16> to vector<1x4x1x16xbf16>
    tpu.vector_store %arg6[%c0_35, %c0_36, %c5, %c0_37], %69 {strides = array<i32>} : memref<1x4x8x16xbf16, #tpu.memory_space<vmem>>, vector<1x4x1x16xbf16>,
    %70 = vector.extract_strided_slice %26 {offsets = [6, 0, 0], sizes = [1, 16, 32], strides = [1, 1, 1]} : vector<8x16x32xbf16> to vector<1x16x32xbf16>
    %71 = vector.shape_cast %70 : vector<1x16x32xbf16> to vector<16x32xbf16>
    %cst_38 = arith.constant dense<0.000000e+00> : vector<4x16xf32>
    %72 = tpu.matmul %27, %71, %cst_38 {dimension_numbers = #tpu.dot_dimension_numbers<[1], [1], [0], [0], [0, 0, 1, 0], [], []>} : vector<4x32xbf16>, vector<16x32xbf16>, vector<4x16xf32> -> vector<4x16xf32>
    %73 = arith.truncf %72 : vector<4x16xf32> to vector<4x16xbf16>
    %c0_39 = arith.constant 0 : index
    %c0_40 = arith.constant 0 : index
    %c6 = arith.constant 6 : index
    %c0_41 = arith.constant 0 : index
    %74 = vector.load %arg6[%c0_39, %c0_40, %c6, %c0_41] : memref<1x4x8x16xbf16, #tpu.memory_space<vmem>>, vector<1x4x1x16xbf16>
    %75 = vector.shape_cast %74 : vector<1x4x1x16xbf16> to vector<4x16xbf16>
    %76 = vector.shape_cast %73 : vector<4x16xbf16> to vector<1x4x1x16xbf16>
    tpu.vector_store %arg6[%c0_39, %c0_40, %c6, %c0_41], %76 {strides = array<i32>} : memref<1x4x8x16xbf16, #tpu.memory_space<vmem>>, vector<1x4x1x16xbf16>,
    %77 = vector.extract_strided_slice %26 {offsets = [7, 0, 0], sizes = [1, 16, 32], strides = [1, 1, 1]} : vector<8x16x32xbf16> to vector<1x16x32xbf16>
    %78 = vector.shape_cast %77 : vector<1x16x32xbf16> to vector<16x32xbf16>
    %cst_42 = arith.constant dense<0.000000e+00> : vector<4x16xf32>
    %79 = tpu.matmul %27, %78, %cst_42 {dimension_numbers = #tpu.dot_dimension_numbers<[1], [1], [0], [0], [0, 0, 1, 0], [], []>} : vector<4x32xbf16>, vector<16x32xbf16>, vector<4x16xf32> -> vector<4x16xf32>
    %80 = arith.truncf %79 : vector<4x16xf32> to vector<4x16xbf16>
    %c0_43 = arith.constant 0 : index
    %c0_44 = arith.constant 0 : index
    %c7 = arith.constant 7 : index
    %c0_45 = arith.constant 0 : index
    %81 = vector.load %arg6[%c0_43, %c0_44, %c7, %c0_45] : memref<1x4x8x16xbf16, #tpu.memory_space<vmem>>, vector<1x4x1x16xbf16>
    %82 = vector.shape_cast %81 : vector<1x4x1x16xbf16> to vector<4x16xbf16>
    %83 = vector.shape_cast %80 : vector<4x16xbf16> to vector<1x4x1x16xbf16>
    tpu.vector_store %arg6[%c0_43, %c0_44, %c7, %c0_45], %83 {strides = array<i32>} : memref<1x4x8x16xbf16, #tpu.memory_space<vmem>>, vector<1x4x1x16xbf16>,
    return
  }
  func.func @transform_0(%arg0: i32, %arg1: i32) -> (i32, i32, i32, i32) {
    %c0_i32 = arith.constant 0 : i32
    %c0_i32_0 = arith.constant 0 : i32
    %c0_i32_1 = arith.constant 0 : i32
    return %arg0, %arg1, %c0_i32, %c0_i32_0 : i32, i32, i32, i32
  }
  func.func @transform_1(%arg0: i32, %arg1: i32) -> (i32, i32) {
    %c0_i32 = arith.constant 0 : i32
    %c0_i32_0 = arith.constant 0 : i32
    %c0_i32_1 = arith.constant 0 : i32
    return %c0_i32, %c0_i32_0 : i32, i32
  }
  func.func @transform_2(%arg0: i32, %arg1: i32) -> (i32, i32) {
    %c0_i32 = arith.constant 0 : i32
    %c0_i32_0 = arith.constant 0 : i32
    %c0_i32_1 = arith.constant 0 : i32
    return %c0_i32, %c0_i32_0 : i32, i32
  }
  func.func @transform_3(%arg0: i32, %arg1: i32) -> (i32, i32) {
    %c0_i32 = arith.constant 0 : i32
    %c0_i32_0 = arith.constant 0 : i32
    %c0_i32_1 = arith.constant 0 : i32
    return %c0_i32, %c0_i32_0 : i32, i32
  }
  func.func @transform_4(%arg0: i32, %arg1: i32) -> (i32, i32, i32, i32) {
    %c0_i32 = arith.constant 0 : i32
    %c0_i32_0 = arith.constant 0 : i32
    %c0_i32_1 = arith.constant 0 : i32
    return %arg0, %c0_i32, %arg1, %c0_i32_0 : i32, i32, i32, i32
  }
}

</mosaic_0001>

<llo_original>
// kernel: tpu_custom_call.1
$region0: #{tpu_custom_call.1}
  #allocation0 [shape = 'u32[]', space=smem, size = 0x4, offset = 0x4, fixed_abs, tag = 'smem constant byte address 0x4 - core index']
  #allocation1 [shape = 'u32[72,128]{1,0:T(1,128)}', space=vmem, size = 0x9000, scoped, tag = 'internal scratch']
  %s0 = inlined_call_operand.hbm [shape: f32[2,16,16,32], index: 0, kind: input, shape index: {}]
  %s1 = inlined_call_operand.hbm [shape: f32[1,32], index: 1, kind: input, shape index: {}]
  %s2 = inlined_call_operand.hbm [shape: f32[1,32], index: 2, kind: input, shape index: {}]
  %s3 = inlined_call_operand.vmem [shape: bf16[4,32], index: 3, kind: input, shape index: {}]
  %s4 = inlined_call_operand.hbm [shape: bf16[2,4,16,16], index: 4, kind: output, shape index: {}]
  %s5 = sld [smem:[#allocation0]]
  $region61: #{tpu_custom_call.1} parent=0
    _
  %s7 = ssub.s32 1, %s5
  %s8 = scalar_select 0, %s7, %s5
  $region1: #{tpu_custom_call.1} parent=0
    #allocation2 [shape = 'u8[131072]{0}', space=vmem, size = 0x20000, scoped, tag = 'input window, operand 0']
    #allocation3 [shape = 's32[2]{0}', space=sflag, size = 0x8, scoped, tag = 'scoped memory for tpu_custom_call.1']
    #allocation4 [shape = 's32[2]{0}', space=sflag, size = 0x8, scoped, tag = 'scoped memory for tpu_custom_call.1']
    #allocation5 [shape = 'u8[512]{0}', space=vmem, size = 0x400, scoped, tag = 'input window, operand 1, single buffered']
    #allocation6 [shape = 's32[1]{0}', space=sflag, size = 0x4, scoped, tag = 'scoped memory for tpu_custom_call.1']
    #allocation7 [shape = 'u8[512]{0}', space=vmem, size = 0x400, scoped, tag = 'input window, operand 2, single buffered']
    #allocation8 [shape = 'u8[16384]{0}', space=vmem, size = 0x4000, scoped, tag = 'output window, operand 0']
    %9 = vsyncpa [#allocation3], 0
    %s10 = scalar_lea.sflag [#allocation3], 1
    %11 = vsyncpa %s10, 0
    %12 = vsyncpa [#allocation6], 0
    %13 = vsyncpa [#allocation4], 0
    %s14 = scalar_lea.sflag [#allocation4], 1
    %15 = vsyncpa %s14, 0
    loop: start=0, step=1, limit=6
    $region2: #{tpu_custom_call.1} parent=1 // loop_pre_header
      _
    $region3: #{tpu_custom_call.1} parent=1 // loop_header
      %s17 = sphi 0, %s21
      %p18 = scmp.ge.s32.totalorder %s17, 6
      %s24 = sphi 0, %s36
      %s25 = sphi 0, %s32
      %s26 = sphi 0, %s24
      %s27 = sphi 0, %s25
      %s28 = sphi 0, %s26
      %s29 = sphi 0, %s27
      %s41 = sphi 0, %s43
      %s44 = sphi 0, %s41
      %s45 = sphi 0, %s44
      %s61 = sphi 0, %s45
      %s65 = sphi 0, %s65
      %s67 = sphi 0, %s65
      %s68 = sphi 0, %s67
      %s82 = sphi 0, %s68
      %s86 = sphi 0, %s86
      %s88 = sphi 0, %s86
      %s89 = sphi 0, %s88
      %s103 = sphi 0, %s89
      %s107 = sphi 0, %s107
      %s109 = sphi 0, %s107
      %s110 = sphi 0, %s109
      %s124 = sphi 0, %s110
      %s132 = sphi 0, %s134
      %s135 = sphi 0, %s132
      %s136 = sphi 0, %s135
      %s152 = sphi 0, %s136
    $region4: #{tpu_custom_call.1} parent=1 // loop_header_branch
      %20 = sbr.rel (%p18) target = $region8
    $region5: #{tpu_custom_call.1} parent=1 // loop_body
      %s22 = ssub.s32 %s17, 1
      %s23 = ssub.s32 %s17, 2
      %s30 = sadd.s32 1, %s25
      %p31 = scmp.ge.s32.totalorder %s30, 2
      %s32 = scalar_select %p31, 0, %s30
      %s33 = sadd.s32 1, %s24
      %s34 = scalar_select %p31, %s33, %s24
      %p35 = scmp.ge.s32.totalorder %s34, 2
      %s36 = scalar_select %p35, 0, %s34
      %s37 = ssub.s32 %s24, %s36
      %s38 = ssub.s32 %s25, %s32
      %s39 = sor.u32 %s37, %s38
      %p40 = scmp.eq.s32.totalorder %s39, 0
      %s42 = sadd.s32 %s41, 1
      %s43 = scalar_select %p40, %s41, %s42
      %p46 = pneg %p40
      %p47 = scmp.eq.s32.totalorder %s17, 3
      %p48 = por %p46, %p47
      %p49 = scmp.ne.s32.totalorder %s41, %s44
      %p50 = scmp.eq.s32.totalorder %s17, 0
      %p51 = por %p49, %p50
      %p52 = scmp.ne.s32.totalorder %s41, %s44
      %p53 = scmp.eq.s32.totalorder %s22, 3
      %p54 = por %p52, %p53
      %p55 = scmp.ne.s32.totalorder %s44, %s45
      %p56 = scmp.eq.s32.totalorder %s22, 0
      %p57 = por %p55, %p56
      %p58 = scmp.ne.s32.totalorder %s44, %s45
      %p59 = scmp.eq.s32.totalorder %s23, 3
      %p60 = por %p58, %p59
      %p62 = scmp.ne.s32.totalorder %s45, %s61
      %p63 = scmp.eq.s32.totalorder %s23, 0
      %p64 = por %p62, %p63
      %s66 = sadd.s32 %s65, 1
      %p69 = scmp.eq.s32.totalorder %s17, 3
      %p70 = scmp.ne.s32.totalorder %s65, %s67
      %p71 = scmp.eq.s32.totalorder %s17, 0
      %p72 = por %p70, %p71
      %p73 = scmp.ne.s32.totalorder %s65, %s67
      %p74 = scmp.eq.s32.totalorder %s22, 3
      %p75 = por %p73, %p74
      %p76 = scmp.ne.s32.totalorder %s67, %s68
      %p77 = scmp.eq.s32.totalorder %s22, 0
      %p78 = por %p76, %p77
      %p79 = scmp.ne.s32.totalorder %s67, %s68
      %p80 = scmp.eq.s32.totalorder %s23, 3
      %p81 = por %p79, %p80
      %p83 = scmp.ne.s32.totalorder %s68, %s82
      %p84 = scmp.eq.s32.totalorder %s23, 0
      %p85 = por %p83, %p84
      %s87 = sadd.s32 %s86, 1
      %p90 = scmp.eq.s32.totalorder %s17, 3
      %p91 = scmp.ne.s32.totalorder %s86, %s88
      %p92 = scmp.eq.s32.totalorder %s17, 0
      %p93 = por %p91, %p92
      %p94 = scmp.ne.s32.totalorder %s86, %s88
      %p95 = scmp.eq.s32.totalorder %s22, 3
      %p96 = por %p94, %p95
      %p97 = scmp.ne.s32.totalorder %s88, %s89
      %p98 = scmp.eq.s32.totalorder %s22, 0
      %p99 = por %p97, %p98
      %p100 = scmp.ne.s32.totalorder %s88, %s89
      %p101 = scmp.eq.s32.totalorder %s23, 3
      %p102 = por %p100, %p101
      %p104 = scmp.ne.s32.totalorder %s89, %s103
      %p105 = scmp.eq.s32.totalorder %s23, 0
      %p106 = por %p104, %p105
      %s108 = sadd.s32 %s107, 1
      %p111 = scmp.eq.s32.totalorder %s17, 3
      %p112 = scmp.ne.s32.totalorder %s107, %s109
      %p113 = scmp.eq.s32.totalorder %s17, 0
      %p114 = por %p112, %p113
      %p115 = scmp.ne.s32.totalorder %s107, %s109
      %p116 = scmp.eq.s32.totalorder %s22, 3
      %p117 = por %p115, %p116
      %p118 = scmp.ne.s32.totalorder %s109, %s110
      %p119 = scmp.eq.s32.totalorder %s22, 0
      %p120 = por %p118, %p119
      %p121 = scmp.ne.s32.totalorder %s109, %s110
      %p122 = scmp.eq.s32.totalorder %s23, 3
      %p123 = por %p121, %p122
      %p125 = scmp.ne.s32.totalorder %s110, %s124
      %p126 = scmp.eq.s32.totalorder %s23, 0
      %p127 = por %p125, %p126
      %s128 = ssub.s32 %s24, %s36
      %s129 = ssub.s32 %s25, %s32
      %s130 = sor.u32 %s128, %s129
      %p131 = scmp.eq.s32.totalorder %s130, 0
      %s133 = sadd.s32 %s132, 1
      %s134 = scalar_select %p131, %s132, %s133
      %p137 = pneg %p131
      %p138 = scmp.eq.s32.totalorder %s17, 3
      %p139 = por %p137, %p138
      %p140 = scmp.ne.s32.totalorder %s132, %s135
      %p141 = scmp.eq.s32.totalorder %s17, 0
      %p142 = por %p140, %p141
      %p143 = scmp.ne.s32.totalorder %s132, %s135
      %p144 = scmp.eq.s32.totalorder %s22, 3
      %p145 = por %p143, %p144
      %p146 = scmp.ne.s32.totalorder %s135, %s136
      %p147 = scmp.eq.s32.totalorder %s22, 0
      %p148 = por %p146, %p147
      %p149 = scmp.ne.s32.totalorder %s135, %s136
      %p150 = scmp.eq.s32.totalorder %s23, 3
      %p151 = por %p149, %p150
      %p153 = scmp.ne.s32.totalorder %s136, %s152
      %p154 = scmp.eq.s32.totalorder %s23, 0
      %p155 = por %p153, %p154
      %p156 = scmp.le.s32.totalorder 1, %s17
      %p157 = scmp.lt.s32.totalorder %s17, 5
      %p158 = pnand %p156, %p157
      %p159 = pneg %p158
      // Predicated region
      $region9: #{tpu_custom_call.1} parent=5 // pred_check
        _
      $region10: #{tpu_custom_call.1} parent=5 // pred_check_branch
        %161 = sbr.rel (%p158) target = $region12
      $region11: #{tpu_custom_call.1} parent=5 // pred_region
        %s162 = ssub.s32 %s17, 1
        // Predicated region
        $region13: #{tpu_custom_call.1} parent=11 // pred_check
          %p163 = pneg %p78
        $region14: #{tpu_custom_call.1} parent=11 // pred_check_branch
          %165 = sbr.rel (%p163) target = $region16
        $region15: #{tpu_custom_call.1} parent=11 // pred_region
          %167 = vsyncadd [#allocation6], 0
          %s169 = sshll.u32 %s1, 4
          %s170 = int_to_ptr.hbm [resolvable:$true] %s169
          %s171 = sshll.u32 [#allocation5], 4
          %s172 = int_to_ptr.vmem [resolvable:$true] %s171
          %174 = dma.hbm_to_vmem [thread:$0]  %s170, 16, %s172, [#allocation6]
        $region16: #{tpu_custom_call.1} parent=11 // pred_fallthru
          _
        // Predicated region
        $region17: #{tpu_custom_call.1} parent=11 // pred_check
          %p175 = pneg %p99
        $region18: #{tpu_custom_call.1} parent=11 // pred_check_branch
          %177 = sbr.rel (%p175) target = $region20
        $region19: #{tpu_custom_call.1} parent=11 // pred_region
          %179 = vsyncadd [#allocation6], 0
          %s181 = sshll.u32 %s2, 4
          %s182 = int_to_ptr.hbm [resolvable:$true] %s181
          %s183 = sshll.u32 [#allocation7], 4
          %s184 = int_to_ptr.vmem [resolvable:$true] %s183
          %186 = dma.hbm_to_vmem [thread:$0]  %s182, 16, %s184, [#allocation6]
        $region20: #{tpu_custom_call.1} parent=11 // pred_fallthru
          _
        // Predicated region
        $region21: #{tpu_custom_call.1} parent=11 // pred_check
          %p187 = pneg %p120
        $region22: #{tpu_custom_call.1} parent=11 // pred_check_branch
          %189 = sbr.rel (%p187) target = $region24
        $region23: #{tpu_custom_call.1} parent=11 // pred_region
          _
        $region24: #{tpu_custom_call.1} parent=11 // pred_fallthru
          _
      $region12: #{tpu_custom_call.1} parent=5 // pred_fallthru
        _
      %p190 = scmp.lt.s32.totalorder %s17, 4
      // Predicated region
      $region25: #{tpu_custom_call.1} parent=5 // pred_check
        %p191 = pneg %p190
      $region26: #{tpu_custom_call.1} parent=5 // pred_check_branch
        %193 = sbr.rel (%p191) target = $region28
      $region27: #{tpu_custom_call.1} parent=5 // pred_region
        // Predicated region
        $region29: #{tpu_custom_call.1} parent=27 // pred_check
          %p194 = pneg %p51
        $region30: #{tpu_custom_call.1} parent=27 // pred_check_branch
          %196 = sbr.rel (%p194) target = $region32
        $region31: #{tpu_custom_call.1} parent=27 // pred_region
          %s197 = sand.u32 %s41, 1
          %s198 = scalar_lea.sflag [#allocation3], %s197
          %s199 = sand.u32 %s41, 1
          %s200 = smul.addr %s199, 128
          %s201 = scalar_lea.vmem [#allocation2], %s200
          %s202 = smul.u32 8, %s25
          %204 = vsyncadd %s198, 0
          %s205 = smul.addr %s202, 2
          %s206 = smul.addr %s24, 32
          %s207 = sadd.s32 %s205, %s206
          %s208 = smul.addr %s207, 8
          %s209 = scalar_lea.hbm %s0, %s208
          %s210 = sshll.u32 %s209, 4
          %s211 = int_to_ptr.hbm [resolvable:$true] %s210
          %s212 = sshll.u32 %s201, 4
          %s213 = int_to_ptr.vmem [resolvable:$true] %s212
          %218 = dma.hbm_to_vmem [thread:$0]  %s211, 2048, %s213, %s198, 128, 128, 8
        $region32: #{tpu_custom_call.1} parent=27 // pred_fallthru
          _
      $region28: #{tpu_custom_call.1} parent=5 // pred_fallthru
        _
      %p219 = scmp.le.s32.totalorder 1, %s17
      %p220 = scmp.lt.s32.totalorder %s17, 5
      %p221 = pnand %p219, %p220
      %p222 = pneg %p221
      // Predicated region
      $region33: #{tpu_custom_call.1} parent=5 // pred_check
        _
      $region34: #{tpu_custom_call.1} parent=5 // pred_check_branch
        %224 = sbr.rel (%p221) target = $region36
      $region35: #{tpu_custom_call.1} parent=5 // pred_region
        %s225 = ssub.s32 %s17, 1
        %s226 = sand.u32 %s44, 1
        %s227 = scalar_lea.sflag [#allocation3], %s226
        %s228 = sand.u32 %s44, 1
        %s229 = smul.addr %s228, 128
        %s230 = scalar_lea.vmem [#allocation2], %s229
        // Predicated region
        $region37: #{tpu_custom_call.1} parent=35 // pred_check
          %p231 = pneg %p57
        $region38: #{tpu_custom_call.1} parent=35 // pred_check_branch
          %233 = sbr.rel (%p231) target = $region40
        $region39: #{tpu_custom_call.1} parent=35 // pred_region
          %235 = dma.done %s227, 2048
        $region40: #{tpu_custom_call.1} parent=35 // pred_fallthru
          _
        // Predicated region
        $region41: #{tpu_custom_call.1} parent=35 // pred_check
          %p236 = pneg %p78
        $region42: #{tpu_custom_call.1} parent=35 // pred_check_branch
          %238 = sbr.rel (%p236) target = $region44
        $region43: #{tpu_custom_call.1} parent=35 // pred_region
          %240 = dma.done [#allocation6], 16
        $region44: #{tpu_custom_call.1} parent=35 // pred_fallthru
          _
        // Predicated region
        $region45: #{tpu_custom_call.1} parent=35 // pred_check
          %p241 = pneg %p99
        $region46: #{tpu_custom_call.1} parent=35 // pred_check_branch
          %243 = sbr.rel (%p241) target = $region48
        $region47: #{tpu_custom_call.1} parent=35 // pred_region
          %245 = dma.done [#allocation6], 16
        $region48: #{tpu_custom_call.1} parent=35 // pred_fallthru
          _
        %s246 = sand.u32 %s44, 1
        %s247 = scalar_lea.sflag [#allocation3], %s246
        %s248 = sand.u32 %s44, 1
        %s249 = smul.addr %s248, 128
        %s250 = scalar_lea.vmem [#allocation2], %s249
        %p251 = pneg %p57
        %p252 = pneg %p54
        %p253 = pneg %p78
        %p254 = pneg %p75
        %p255 = pneg %p99
        %p256 = pneg %p96
        %p257 = pneg %p120
        %p258 = pneg %p117
        %p259 = pneg %p148
        %p260 = pneg %p145
        %s261 = sand.u32 %s135, 1
        %s262 = scalar_lea.sflag [#allocation4], %s261
        %s263 = sand.u32 %s135, 1
        %s264 = smul.addr %s263, 16
        %s265 = scalar_lea.vmem [#allocation8], %s264
        %s266 = smul.u32 8, %s27
        %v268 = vld [vmem:[%s230] sm:$0xff]
        %v269 = vld [vmem:[%s230 + $0x8] sm:$0xff]
        %v270 = vld [vmem:[%s230 + $0x10] sm:$0xff]
        %v271 = vld [vmem:[%s230 + $0x18] sm:$0xff]
        %v272 = vld [vmem:[%s230 + $0x20] sm:$0xff]
        %v273 = vld [vmem:[%s230 + $0x28] sm:$0xff]
        %v274 = vld [vmem:[%s230 + $0x30] sm:$0xff]
        %v275 = vld [vmem:[%s230 + $0x38] sm:$0xff]
        %v276 = vld [vmem:[%s230 + $0x40] sm:$0xff]
        %v277 = vld [vmem:[%s230 + $0x48] sm:$0xff]
        %v278 = vld [vmem:[%s230 + $0x50] sm:$0xff]
        %v279 = vld [vmem:[%s230 + $0x58] sm:$0xff]
        %v280 = vld [vmem:[%s230 + $0x60] sm:$0xff]
        %v281 = vld [vmem:[%s230 + $0x68] sm:$0xff]
        %v282 = vld [vmem:[%s230 + $0x70] sm:$0xff]
        %v283 = vld [vmem:[%s230 + $0x78] sm:$0xff]
        %vm284 = vcmask 261120
        %v285 = vsel %vm284, %v268, 0.0
        %286 = vadd.xlane.f32.xlu0 %v285
        %v287 = vpop.xlane.xlu0 %286
        %v288 = vsel %vm284, %v269, 0.0
        %289 = vadd.xlane.f32.xlu0 %v288
        %v290 = vpop.xlane.xlu0 %289
        %v291 = vsel %vm284, %v270, 0.0
        %292 = vadd.xlane.f32.xlu0 %v291
        %v293 = vpop.xlane.xlu0 %292
        %v294 = vsel %vm284, %v271, 0.0
        %295 = vadd.xlane.f32.xlu0 %v294
        %v296 = vpop.xlane.xlu0 %295
        %v297 = vsel %vm284, %v272, 0.0
        %298 = vadd.xlane.f32.xlu0 %v297
        %v299 = vpop.xlane.xlu0 %298
        %v300 = vsel %vm284, %v273, 0.0
        %301 = vadd.xlane.f32.xlu0 %v300
        %v302 = vpop.xlane.xlu0 %301
        %v303 = vsel %vm284, %v274, 0.0
        %304 = vadd.xlane.f32.xlu0 %v303
        %v305 = vpop.xlane.xlu0 %304
        %v306 = vsel %vm284, %v275, 0.0
        %307 = vadd.xlane.f32.xlu0 %v306
        %v308 = vpop.xlane.xlu0 %307
        %v309 = vsel %vm284, %v276, 0.0
        %310 = vadd.xlane.f32.xlu0 %v309
        %v311 = vpop.xlane.xlu0 %310
        %v312 = vsel %vm284, %v277, 0.0
        %313 = vadd.xlane.f32.xlu0 %v312
        %v314 = vpop.xlane.xlu0 %313
        %v315 = vsel %vm284, %v278, 0.0
        %316 = vadd.xlane.f32.xlu0 %v315
        %v317 = vpop.xlane.xlu0 %316
        %v318 = vsel %vm284, %v279, 0.0
        %319 = vadd.xlane.f32.xlu0 %v318
        %v320 = vpop.xlane.xlu0 %319
        %v321 = vsel %vm284, %v280, 0.0
        %322 = vadd.xlane.f32.xlu0 %v321
        %v323 = vpop.xlane.xlu0 %322
        %v324 = vsel %vm284, %v281, 0.0
        %325 = vadd.xlane.f32.xlu0 %v324
        %v326 = vpop.xlane.xlu0 %325
        %v327 = vsel %vm284, %v282, 0.0
        %328 = vadd.xlane.f32.xlu0 %v327
        %v329 = vpop.xlane.xlu0 %328
        %v330 = vsel %vm284, %v283, 0.0
        %331 = vadd.xlane.f32.xlu0 %v330
        %v332 = vpop.xlane.xlu0 %331
        %v333 = vrcp.pop 32.0
        %v334 = vmul.f32 32.0, %v333
        %v335 = vsub.f32 1.0, %v334
        %v336 = vmul.f32 %v333, %v335
        %v337 = vadd.f32 %v333, %v336
        %vm338 = vweird.f32 %v333
        %v339 = vsel %vm338, %v333, %v337
        %v340 = vmul.f32 %v287, %v339
        %v341 = vmul.f32 %v290, %v339
        %v342 = vmul.f32 %v293, %v339
        %v343 = vmul.f32 %v296, %v339
        %v344 = vmul.f32 %v299, %v339
        %v345 = vmul.f32 %v302, %v339
        %v346 = vmul.f32 %v305, %v339
        %v347 = vmul.f32 %v308, %v339
        %v348 = vmul.f32 %v311, %v339
        %v349 = vmul.f32 %v314, %v339
        %v350 = vmul.f32 %v317, %v339
        %v351 = vmul.f32 %v320, %v339
        %v352 = vmul.f32 %v323, %v339
        %v353 = vmul.f32 %v326, %v339
        %v354 = vmul.f32 %v329, %v339
        %v355 = vmul.f32 %v332, %v339
        %v356 = vsub.f32 %v268, %v340
        %v357 = vsub.f32 %v269, %v341
        %v358 = vsub.f32 %v270, %v342
        %v359 = vsub.f32 %v271, %v343
        %v360 = vsub.f32 %v272, %v344
        %v361 = vsub.f32 %v273, %v345
        %v362 = vsub.f32 %v274, %v346
        %v363 = vsub.f32 %v275, %v347
        %v364 = vsub.f32 %v276, %v348
        %v365 = vsub.f32 %v277, %v349
        %v366 = vsub.f32 %v278, %v350
        %v367 = vsub.f32 %v279, %v351
        %v368 = vsub.f32 %v280, %v352
        %v369 = vsub.f32 %v281, %v353
        %v370 = vsub.f32 %v282, %v354
        %v371 = vsub.f32 %v283, %v355
        %v372 = vmul.f32 %v356, %v356
        %v373 = vmul.f32 %v357, %v357
        %v374 = vmul.f32 %v358, %v358
        %v375 = vmul.f32 %v359, %v359
        %v376 = vmul.f32 %v360, %v360
        %v377 = vmul.f32 %v361, %v361
        %v378 = vmul.f32 %v362, %v362
        %v379 = vmul.f32 %v363, %v363
        %v380 = vmul.f32 %v364, %v364
        %v381 = vmul.f32 %v365, %v365
        %v382 = vmul.f32 %v366, %v366
        %v383 = vmul.f32 %v367, %v367
        %v384 = vmul.f32 %v368, %v368
        %v385 = vmul.f32 %v369, %v369
        %v386 = vmul.f32 %v370, %v370
        %v387 = vmul.f32 %v371, %v371
        %v388 = vsel %vm284, %v372, 0.0
        %389 = vadd.xlane.f32.xlu0 %v388
        %v390 = vpop.xlane.xlu0 %389
        %v391 = vsel %vm284, %v373, 0.0
        %392 = vadd.xlane.f32.xlu0 %v391
        %v393 = vpop.xlane.xlu0 %392
        %v394 = vsel %vm284, %v374, 0.0
        %395 = vadd.xlane.f32.xlu0 %v394
        %v396 = vpop.xlane.xlu0 %395
        %v397 = vsel %vm284, %v375, 0.0
        %398 = vadd.xlane.f32.xlu0 %v397
        %v399 = vpop.xlane.xlu0 %398
        %v400 = vsel %vm284, %v376, 0.0
        %401 = vadd.xlane.f32.xlu0 %v400
        %v402 = vpop.xlane.xlu0 %401
        %v403 = vsel %vm284, %v377, 0.0
        %404 = vadd.xlane.f32.xlu0 %v403
        %v405 = vpop.xlane.xlu0 %404
        %v406 = vsel %vm284, %v378, 0.0
        %407 = vadd.xlane.f32.xlu0 %v406
        %v408 = vpop.xlane.xlu0 %407
        %v409 = vsel %vm284, %v379, 0.0
        %410 = vadd.xlane.f32.xlu0 %v409
        %v411 = vpop.xlane.xlu0 %410
        %v412 = vsel %vm284, %v380, 0.0
        %413 = vadd.xlane.f32.xlu0 %v412
        %v414 = vpop.xlane.xlu0 %413
        %v415 = vsel %vm284, %v381, 0.0
        %416 = vadd.xlane.f32.xlu0 %v415
        %v417 = vpop.xlane.xlu0 %416
        %v418 = vsel %vm284, %v382, 0.0
        %419 = vadd.xlane.f32.xlu0 %v418
        %v420 = vpop.xlane.xlu0 %419
        %v421 = vsel %vm284, %v383, 0.0
        %422 = vadd.xlane.f32.xlu0 %v421
        %v423 = vpop.xlane.xlu0 %422
        %v424 = vsel %vm284, %v384, 0.0
        %425 = vadd.xlane.f32.xlu0 %v424
        %v426 = vpop.xlane.xlu0 %425
        %v427 = vsel %vm284, %v385, 0.0
        %428 = vadd.xlane.f32.xlu0 %v427
        %v429 = vpop.xlane.xlu0 %428
        %v430 = vsel %vm284, %v386, 0.0
        %431 = vadd.xlane.f32.xlu0 %v430
        %v432 = vpop.xlane.xlu0 %431
        %v433 = vsel %vm284, %v387, 0.0
        %434 = vadd.xlane.f32.xlu0 %v433
        %v435 = vpop.xlane.xlu0 %434
        %v436 = vmul.f32 %v390, %v339
        %v437 = vmul.f32 %v393, %v339
        %v438 = vmul.f32 %v396, %v339
        %v439 = vmul.f32 %v399, %v339
        %v440 = vmul.f32 %v402, %v339
        %v441 = vmul.f32 %v405, %v339
        %v442 = vmul.f32 %v408, %v339
        %v443 = vmul.f32 %v411, %v339
        %v444 = vmul.f32 %v414, %v339
        %v445 = vmul.f32 %v417, %v339
        %v446 = vmul.f32 %v420, %v339
        %v447 = vmul.f32 %v423, %v339
        %v448 = vmul.f32 %v426, %v339
        %v449 = vmul.f32 %v429, %v339
        %v450 = vmul.f32 %v432, %v339
        %v451 = vmul.f32 %v435, %v339
        %v452 = vadd.f32 %v436, 1e-05
        %v453 = vadd.f32 %v437, 1e-05
        %v454 = vadd.f32 %v438, 1e-05
        %v455 = vadd.f32 %v439, 1e-05
        %v456 = vadd.f32 %v440, 1e-05
        %v457 = vadd.f32 %v441, 1e-05
        %v458 = vadd.f32 %v442, 1e-05
        %v459 = vadd.f32 %v443, 1e-05
        %v460 = vadd.f32 %v444, 1e-05
        %v461 = vadd.f32 %v445, 1e-05
        %v462 = vadd.f32 %v446, 1e-05
        %v463 = vadd.f32 %v447, 1e-05
        %v464 = vadd.f32 %v448, 1e-05
        %v465 = vadd.f32 %v449, 1e-05
        %v466 = vadd.f32 %v450, 1e-05
        %v467 = vadd.f32 %v451, 1e-05
        %v468 = vrsqrt.pop %v452
        %v469 = vmul.f32 %v468, %v452
        %v470 = vmul.f32 %v469, %v468
        %v471 = vmul.f32 0.5, %v470
        %v472 = vsub.f32 1.5, %v471
        %v473 = vmul.f32 %v468, %v472
        %vm474 = vweird.f32 %v452
        %vm475 = vweird.f32 %v468
        %vm476 = vmor %vm474, %vm475
        %v477 = vsel %vm476, %v468, %v473
        %v478 = vrsqrt.pop %v453
        %v479 = vmul.f32 %v478, %v453
        %v480 = vmul.f32 %v479, %v478
        %v481 = vmul.f32 0.5, %v480
        %v482 = vsub.f32 1.5, %v481
        %v483 = vmul.f32 %v478, %v482
        %vm484 = vweird.f32 %v453
        %vm485 = vweird.f32 %v478
        %vm486 = vmor %vm484, %vm485
        %v487 = vsel %vm486, %v478, %v483
        %v488 = vrsqrt.pop %v454
        %v489 = vmul.f32 %v488, %v454
        %v490 = vmul.f32 %v489, %v488
        %v491 = vmul.f32 0.5, %v490
        %v492 = vsub.f32 1.5, %v491
        %v493 = vmul.f32 %v488, %v492
        %vm494 = vweird.f32 %v454
        %vm495 = vweird.f32 %v488
        %vm496 = vmor %vm494, %vm495
        %v497 = vsel %vm496, %v488, %v493
        %v498 = vrsqrt.pop %v455
        %v499 = vmul.f32 %v498, %v455
        %v500 = vmul.f32 %v499, %v498
        %v501 = vmul.f32 0.5, %v500
        %v502 = vsub.f32 1.5, %v501
        %v503 = vmul.f32 %v498, %v502
        %vm504 = vweird.f32 %v455
        %vm505 = vweird.f32 %v498
        %vm506 = vmor %vm504, %vm505
        %v507 = vsel %vm506, %v498, %v503
        %v508 = vrsqrt.pop %v456
        %v509 = vmul.f32 %v508, %v456
        %v510 = vmul.f32 %v509, %v508
        %v511 = vmul.f32 0.5, %v510
        %v512 = vsub.f32 1.5, %v511
        %v513 = vmul.f32 %v508, %v512
        %vm514 = vweird.f32 %v456
        %vm515 = vweird.f32 %v508
        %vm516 = vmor %vm514, %vm515
        %v517 = vsel %vm516, %v508, %v513
        %v518 = vrsqrt.pop %v457
        %v519 = vmul.f32 %v518, %v457
        %v520 = vmul.f32 %v519, %v518
        %v521 = vmul.f32 0.5, %v520
        %v522 = vsub.f32 1.5, %v521
        %v523 = vmul.f32 %v518, %v522
        %vm524 = vweird.f32 %v457
        %vm525 = vweird.f32 %v518
        %vm526 = vmor %vm524, %vm525
        %v527 = vsel %vm526, %v518, %v523
        %v528 = vrsqrt.pop %v458
        %v529 = vmul.f32 %v528, %v458
        %v530 = vmul.f32 %v529, %v528
        %v531 = vmul.f32 0.5, %v530
        %v532 = vsub.f32 1.5, %v531
        %v533 = vmul.f32 %v528, %v532
        %vm534 = vweird.f32 %v458
        %vm535 = vweird.f32 %v528
        %vm536 = vmor %vm534, %vm535
        %v537 = vsel %vm536, %v528, %v533
        %v538 = vrsqrt.pop %v459
        %v539 = vmul.f32 %v538, %v459
        %v540 = vmul.f32 %v539, %v538
        %v541 = vmul.f32 0.5, %v540
        %v542 = vsub.f32 1.5, %v541
        %v543 = vmul.f32 %v538, %v542
        %vm544 = vweird.f32 %v459
        %vm545 = vweird.f32 %v538
        %vm546 = vmor %vm544, %vm545
        %v547 = vsel %vm546, %v538, %v543
        %v548 = vrsqrt.pop %v460
        %v549 = vmul.f32 %v548, %v460
        %v550 = vmul.f32 %v549, %v548
        %v551 = vmul.f32 0.5, %v550
        %v552 = vsub.f32 1.5, %v551
        %v553 = vmul.f32 %v548, %v552
        %vm554 = vweird.f32 %v460
        %vm555 = vweird.f32 %v548
        %vm556 = vmor %vm554, %vm555
        %v557 = vsel %vm556, %v548, %v553
        %v558 = vrsqrt.pop %v461
        %v559 = vmul.f32 %v558, %v461
        %v560 = vmul.f32 %v559, %v558
        %v561 = vmul.f32 0.5, %v560
        %v562 = vsub.f32 1.5, %v561
        %v563 = vmul.f32 %v558, %v562
        %vm564 = vweird.f32 %v461
        %vm565 = vweird.f32 %v558
        %vm566 = vmor %vm564, %vm565
        %v567 = vsel %vm566, %v558, %v563
        %v568 = vrsqrt.pop %v462
        %v569 = vmul.f32 %v568, %v462
        %v570 = vmul.f32 %v569, %v568
        %v571 = vmul.f32 0.5, %v570
        %v572 = vsub.f32 1.5, %v571
        %v573 = vmul.f32 %v568, %v572
        %vm574 = vweird.f32 %v462
        %vm575 = vweird.f32 %v568
        %vm576 = vmor %vm574, %vm575
        %v577 = vsel %vm576, %v568, %v573
        %v578 = vrsqrt.pop %v463
        %v579 = vmul.f32 %v578, %v463
        %v580 = vmul.f32 %v579, %v578
        %v581 = vmul.f32 0.5, %v580
        %v582 = vsub.f32 1.5, %v581
        %v583 = vmul.f32 %v578, %v582
        %vm584 = vweird.f32 %v463
        %vm585 = vweird.f32 %v578
        %vm586 = vmor %vm584, %vm585
        %v587 = vsel %vm586, %v578, %v583
        %v588 = vrsqrt.pop %v464
        %v589 = vmul.f32 %v588, %v464
        %v590 = vmul.f32 %v589, %v588
        %v591 = vmul.f32 0.5, %v590
        %v592 = vsub.f32 1.5, %v591
        %v593 = vmul.f32 %v588, %v592
        %vm594 = vweird.f32 %v464
        %vm595 = vweird.f32 %v588
        %vm596 = vmor %vm594, %vm595
        %v597 = vsel %vm596, %v588, %v593
        %v598 = vrsqrt.pop %v465
        %v599 = vmul.f32 %v598, %v465
        %v600 = vmul.f32 %v599, %v598
        %v601 = vmul.f32 0.5, %v600
        %v602 = vsub.f32 1.5, %v601
        %v603 = vmul.f32 %v598, %v602
        %vm604 = vweird.f32 %v465
        %vm605 = vweird.f32 %v598
        %vm606 = vmor %vm604, %vm605
        %v607 = vsel %vm606, %v598, %v603
        %v608 = vrsqrt.pop %v466
        %v609 = vmul.f32 %v608, %v466
        %v610 = vmul.f32 %v609, %v608
        %v611 = vmul.f32 0.5, %v610
        %v612 = vsub.f32 1.5, %v611
        %v613 = vmul.f32 %v608, %v612
        %vm614 = vweird.f32 %v466
        %vm615 = vweird.f32 %v608
        %vm616 = vmor %vm614, %vm615
        %v617 = vsel %vm616, %v608, %v613
        %v618 = vrsqrt.pop %v467
        %v619 = vmul.f32 %v618, %v467
        %v620 = vmul.f32 %v619, %v618
        %v621 = vmul.f32 0.5, %v620
        %v622 = vsub.f32 1.5, %v621
        %v623 = vmul.f32 %v618, %v622
        %vm624 = vweird.f32 %v467
        %vm625 = vweird.f32 %v618
        %vm626 = vmor %vm624, %vm625
        %v627 = vsel %vm626, %v618, %v623
        %v628 = vmul.f32 %v356, %v477
        %v629 = vmul.f32 %v357, %v487
        %v630 = vmul.f32 %v358, %v497
        %v631 = vmul.f32 %v359, %v507
        %v632 = vmul.f32 %v360, %v517
        %v633 = vmul.f32 %v361, %v527
        %v634 = vmul.f32 %v362, %v537
        %v635 = vmul.f32 %v363, %v547
        %v636 = vmul.f32 %v364, %v557
        %v637 = vmul.f32 %v365, %v567
        %v638 = vmul.f32 %v366, %v577
        %v639 = vmul.f32 %v367, %v587
        %v640 = vmul.f32 %v368, %v597
        %v641 = vmul.f32 %v369, %v607
        %v642 = vmul.f32 %v370, %v617
        %v643 = vmul.f32 %v371, %v627
        %v644 = vld [vmem:[#allocation5] sm:$0x1]
        %v646 = vperm.slane %v644, 0
        %v648 = vmul.f32 %v628, %v646
        %v649 = vmul.f32 %v629, %v646
        %v650 = vmul.f32 %v630, %v646
        %v651 = vmul.f32 %v631, %v646
        %v652 = vmul.f32 %v632, %v646
        %v653 = vmul.f32 %v633, %v646
        %v654 = vmul.f32 %v634, %v646
        %v655 = vmul.f32 %v635, %v646
        %v656 = vmul.f32 %v636, %v646
        %v657 = vmul.f32 %v637, %v646
        %v658 = vmul.f32 %v638, %v646
        %v659 = vmul.f32 %v639, %v646
        %v660 = vmul.f32 %v640, %v646
        %v661 = vmul.f32 %v641, %v646
        %v662 = vmul.f32 %v642, %v646
        %v663 = vmul.f32 %v643, %v646
        %v664 = vld [vmem:[#allocation7] sm:$0x1]
        %v666 = vperm.slane %v664, 0
        %v668 = vadd.f32 %v648, %v666
        %v669 = vadd.f32 %v649, %v666
        %v670 = vadd.f32 %v650, %v666
        %v671 = vadd.f32 %v651, %v666
        %v672 = vadd.f32 %v652, %v666
        %v673 = vadd.f32 %v653, %v666
        %v674 = vadd.f32 %v654, %v666
        %v675 = vadd.f32 %v655, %v666
        %v676 = vadd.f32 %v656, %v666
        %v677 = vadd.f32 %v657, %v666
        %v678 = vadd.f32 %v658, %v666
        %v679 = vadd.f32 %v659, %v666
        %v680 = vadd.f32 %v660, %v666
        %v681 = vadd.f32 %v661, %v666
        %v682 = vadd.f32 %v662, %v666
        %v683 = vadd.f32 %v663, %v666
        %v684 = vpack.c.bf16 %v668, %v668
        %v685 = vpack.c.bf16 %v669, %v669
        %v686 = vpack.c.bf16 %v670, %v670
        %v687 = vpack.c.bf16 %v671, %v671
        %v688 = vpack.c.bf16 %v672, %v672
        %v689 = vpack.c.bf16 %v673, %v673
        %v690 = vpack.c.bf16 %v674, %v674
        %v691 = vpack.c.bf16 %v675, %v675
        %v692 = vpack.c.bf16 %v676, %v676
        %v693 = vpack.c.bf16 %v677, %v677
        %v694 = vpack.c.bf16 %v678, %v678
        %v695 = vpack.c.bf16 %v679, %v679
        %v696 = vpack.c.bf16 %v680, %v680
        %v697 = vpack.c.bf16 %v681, %v681
        %v698 = vpack.c.bf16 %v682, %v682
        %v699 = vpack.c.bf16 %v683, %v683
        %v700 = vld [vmem:[%s3] sm:$0x3]
        %v703 = vunpack.c.l.b16 %v684
        %v704 = vunpack.c.l.b16 %v685
        %v705 = vpack.c.b16 %v704, %v703
        %v707 = vsel %vm284, %v700, 0
        %v710 = vsel %vm284, %v705, 0
        %712 = vmatpush.bf16.xpose.msra.mxu0 0
        %713 = vmatpush.bf16.xpose.msra.mxu0 0
        %714 = vmatpush.bf16.xpose.msra.mxu0 0
        %715 = vmatpush.bf16.xpose.msra.mxu0 0
        %716 = vmatpush.bf16.xpose.msra.mxu0 0
        %717 = vmatpush.bf16.xpose.msra.mxu0 0
        %718 = vmatpush.bf16.xpose.msra.mxu0 0
        %719 = vmatpush.bf16.xpose.msra.mxu0 %v710
        %720 = vmatmul.bf16.gmra.mxu0 %v707
        %v721 = vpop.f32.mrf.mxu0
        %v722 = vadd.f32 0.0, %v721
        %v723 = vpop.f32.mrf.mxu0
        %724 = vdwg.mxu0
        %v725 = vpack.c.bf16 %v722, %v722
        %v727 = vrot.slane %v725, 3
        %vm728 = vcmask 1040384
        %v731 = vsel %vm728, %v725, %v727
        %vm733 = vcmask 1041409
        %v734 = vsel %vm733, %v725, %v727
        %v736 = vrot.slane %v734, 1
        %v737 = vunpack.i.l.s16 %v731
        %v738 = vunpack.i.h.s16 %v731
        %v739 = vunpack.i.l.s16 %v736
        %v740 = vunpack.i.h.s16 %v736
        %v741 = vpack.i.b16 %v737, %v737
        %v742 = vpack.i.b16 %v738, %v738
        %v743 = vpack.i.b16 %v739, %v739
        %v744 = vpack.i.b16 %v740, %v740
        %v746 = vunpack.c.l.s4 286326784
        %v747 = vunpack.c.0.s8 %v746
        %v748 = vperm.slane %v741, %v747
        %v750 = vunpack.c.l.s4 286326784
        %v751 = vunpack.c.0.s8 %v750
        %v752 = vperm.slane %v742, %v751
        %v754 = vunpack.c.l.s4 286326784
        %v755 = vunpack.c.0.s8 %v754
        %v756 = vperm.slane %v743, %v755
        %v758 = vunpack.c.l.s4 286326784
        %v759 = vunpack.c.0.s8 %v758
        %v760 = vperm.slane %v744, %v759
        %vm765 = vcmask 122880
        %vm766 = vsmask.f32 256
        %vm767 = vmand %vm765, %vm766
        %v768 = vld [vmem:[%s265] sm:$0x1]
        %v769 = vsel %vm767, %v748, %v768
        %770 = vst [vmem:[%s265] sm:$0x1] %v769
        %v771 = vld [vmem:[%s265 + $0x4] sm:$0x1]
        %v772 = vsel %vm767, %v752, %v771
        %773 = vst [vmem:[%s265 + $0x4] sm:$0x1] %v772
        %v774 = vld [vmem:[%s265 + $0x8] sm:$0x1]
        %v775 = vsel %vm767, %v756, %v774
        %776 = vst [vmem:[%s265 + $0x8] sm:$0x1] %v775
        %v777 = vld [vmem:[%s265 + $0xc] sm:$0x1]
        %v778 = vsel %vm767, %v760, %v777
        %779 = vst [vmem:[%s265 + $0xc] sm:$0x1] %v778
        %v782 = vunpack.c.l.b16 %v686
        %v783 = vunpack.c.l.b16 %v687
        %v784 = vpack.c.b16 %v783, %v782
        %v786 = vsel %vm284, %v784, 0
        %788 = vmatpush.bf16.xpose.msra.mxu0 0
        %789 = vmatpush.bf16.xpose.msra.mxu0 0
        %790 = vmatpush.bf16.xpose.msra.mxu0 0
        %791 = vmatpush.bf16.xpose.msra.mxu0 0
        %792 = vmatpush.bf16.xpose.msra.mxu0 0
        %793 = vmatpush.bf16.xpose.msra.mxu0 0
        %794 = vmatpush.bf16.xpose.msra.mxu0 0
        %795 = vmatpush.bf16.xpose.msra.mxu0 %v786
        %796 = vmatmul.bf16.gmra.mxu0 %v707
        %v797 = vpop.f32.mrf.mxu0
        %v798 = vadd.f32 0.0, %v797
        %v799 = vpop.f32.mrf.mxu0
        %800 = vdwg.mxu0
        %v801 = vpack.c.bf16 %v798, %v798
        %v803 = vrot.slane %v801, 3
        %v806 = vsel %vm728, %v801, %v803
        %v808 = vsel %vm733, %v801, %v803
        %v810 = vrot.slane %v808, 1
        %v811 = vunpack.i.l.s16 %v806
        %v812 = vunpack.i.h.s16 %v806
        %v813 = vunpack.i.l.s16 %v810
        %v814 = vunpack.i.h.s16 %v810
        %v815 = vpack.i.b16 %v811, %v811
        %v816 = vpack.i.b16 %v812, %v812
        %v817 = vpack.i.b16 %v813, %v813
        %v818 = vpack.i.b16 %v814, %v814
        %v820 = vunpack.c.l.s4 286326784
        %v821 = vunpack.c.0.s8 %v820
        %v822 = vperm.slane %v815, %v821
        %v824 = vunpack.c.l.s4 286326784
        %v825 = vunpack.c.0.s8 %v824
        %v826 = vperm.slane %v816, %v825
        %v828 = vunpack.c.l.s4 286326784
        %v829 = vunpack.c.0.s8 %v828
        %v830 = vperm.slane %v817, %v829
        %v832 = vunpack.c.l.s4 286326784
        %v833 = vunpack.c.0.s8 %v832
        %v834 = vperm.slane %v818, %v833
        %vm839 = vsmask.f32 7938
        %vm840 = vmand %vm765, %vm839
        %v841 = vld [vmem:[%s265] sm:$0x1]
        %v842 = vsel %vm840, %v822, %v841
        %843 = vst [vmem:[%s265] sm:$0x1] %v842
        %v844 = vld [vmem:[%s265 + $0x4] sm:$0x1]
        %v845 = vsel %vm840, %v826, %v844
        %846 = vst [vmem:[%s265 + $0x4] sm:$0x1] %v845
        %v847 = vld [vmem:[%s265 + $0x8] sm:$0x1]
        %v848 = vsel %vm840, %v830, %v847
        %849 = vst [vmem:[%s265 + $0x8] sm:$0x1] %v848
        %v850 = vld [vmem:[%s265 + $0xc] sm:$0x1]
        %v851 = vsel %vm840, %v834, %v850
        %852 = vst [vmem:[%s265 + $0xc] sm:$0x1] %v851
        %v855 = vunpack.c.l.b16 %v688
        %v856 = vunpack.c.l.b16 %v689
        %v857 = vpack.c.b16 %v856, %v855
        %v859 = vsel %vm284, %v857, 0
        %861 = vmatpush.bf16.xpose.msra.mxu0 0
        %862 = vmatpush.bf16.xpose.msra.mxu0 0
        %863 = vmatpush.bf16.xpose.msra.mxu0 0
        %864 = vmatpush.bf16.xpose.msra.mxu0 0
        %865 = vmatpush.bf16.xpose.msra.mxu0 0
        %866 = vmatpush.bf16.xpose.msra.mxu0 0
        %867 = vmatpush.bf16.xpose.msra.mxu0 0
        %868 = vmatpush.bf16.xpose.msra.mxu0 %v859
        %869 = vmatmul.bf16.gmra.mxu0 %v707
        %v870 = vpop.f32.mrf.mxu0
        %v871 = vadd.f32 0.0, %v870
        %v872 = vpop.f32.mrf.mxu0
        %873 = vdwg.mxu0
        %v874 = vpack.c.bf16 %v871, %v871
        %v876 = vrot.slane %v874, 3
        %v879 = vsel %vm728, %v874, %v876
        %v881 = vsel %vm733, %v874, %v876
        %v883 = vrot.slane %v881, 1
        %v884 = vunpack.i.l.s16 %v879
        %v885 = vunpack.i.h.s16 %v879
        %v886 = vunpack.i.l.s16 %v883
        %v887 = vunpack.i.h.s16 %v883
        %v888 = vpack.i.b16 %v884, %v884
        %v889 = vpack.i.b16 %v885, %v885
        %v890 = vpack.i.b16 %v886, %v886
        %v891 = vpack.i.b16 %v887, %v887
        %v893 = vunpack.c.l.s4 286326784
        %v894 = vunpack.c.0.s8 %v893
        %v895 = vperm.slane %v888, %v894
        %v897 = vunpack.c.l.s4 286326784
        %v898 = vunpack.c.0.s8 %v897
        %v899 = vperm.slane %v889, %v898
        %v901 = vunpack.c.l.s4 286326784
        %v902 = vunpack.c.0.s8 %v901
        %v903 = vperm.slane %v890, %v902
        %v905 = vunpack.c.l.s4 286326784
        %v906 = vunpack.c.0.s8 %v905
        %v907 = vperm.slane %v891, %v906
        %vm912 = vcmask 123905
        %vm913 = vsmask.f32 1280
        %vm914 = vmand %vm912, %vm913
        %v915 = vld [vmem:[%s265] sm:$0x2]
        %v916 = vsel %vm914, %v895, %v915
        %917 = vst [vmem:[%s265] sm:$0x2] %v916
        %v918 = vld [vmem:[%s265 + $0x4] sm:$0x2]
        %v919 = vsel %vm914, %v899, %v918
        %920 = vst [vmem:[%s265 + $0x4] sm:$0x2] %v919
        %v921 = vld [vmem:[%s265 + $0x8] sm:$0x2]
        %v922 = vsel %vm914, %v903, %v921
        %923 = vst [vmem:[%s265 + $0x8] sm:$0x2] %v922
        %v924 = vld [vmem:[%s265 + $0xc] sm:$0x2]
        %v925 = vsel %vm914, %v907, %v924
        %926 = vst [vmem:[%s265 + $0xc] sm:$0x2] %v925
        %v929 = vunpack.c.l.b16 %v690
        %v930 = vunpack.c.l.b16 %v691
        %v931 = vpack.c.b16 %v930, %v929
        %v933 = vsel %vm284, %v931, 0
        %935 = vmatpush.bf16.xpose.msra.mxu0 0
        %936 = vmatpush.bf16.xpose.msra.mxu0 0
        %937 = vmatpush.bf16.xpose.msra.mxu0 0
        %938 = vmatpush.bf16.xpose.msra.mxu0 0
        %939 = vmatpush.bf16.xpose.msra.mxu0 0
        %940 = vmatpush.bf16.xpose.msra.mxu0 0
        %941 = vmatpush.bf16.xpose.msra.mxu0 0
        %942 = vmatpush.bf16.xpose.msra.mxu0 %v933
        %943 = vmatmul.bf16.gmra.mxu0 %v707
        %v944 = vpop.f32.mrf.mxu0
        %v945 = vadd.f32 0.0, %v944
        %v946 = vpop.f32.mrf.mxu0
        %947 = vdwg.mxu0
        %v948 = vpack.c.bf16 %v945, %v945
        %v950 = vrot.slane %v948, 3
        %v953 = vsel %vm728, %v948, %v950
        %v955 = vsel %vm733, %v948, %v950
        %v957 = vrot.slane %v955, 1
        %v958 = vunpack.i.l.s16 %v953
        %v959 = vunpack.i.h.s16 %v953
        %v960 = vunpack.i.l.s16 %v957
        %v961 = vunpack.i.h.s16 %v957
        %v962 = vpack.i.b16 %v958, %v958
        %v963 = vpack.i.b16 %v959, %v959
        %v964 = vpack.i.b16 %v960, %v960
        %v965 = vpack.i.b16 %v961, %v961
        %v967 = vunpack.c.l.s4 286326784
        %v968 = vunpack.c.0.s8 %v967
        %v969 = vperm.slane %v962, %v968
        %v971 = vunpack.c.l.s4 286326784
        %v972 = vunpack.c.0.s8 %v971
        %v973 = vperm.slane %v963, %v972
        %v975 = vunpack.c.l.s4 286326784
        %v976 = vunpack.c.0.s8 %v975
        %v977 = vperm.slane %v964, %v976
        %v979 = vunpack.c.l.s4 286326784
        %v980 = vunpack.c.0.s8 %v979
        %v981 = vperm.slane %v965, %v980
        %vm986 = vsmask.f32 7942
        %vm987 = vmand %vm912, %vm986
        %v988 = vld [vmem:[%s265] sm:$0x2]
        %v989 = vsel %vm987, %v969, %v988
        %990 = vst [vmem:[%s265] sm:$0x2] %v989
        %v991 = vld [vmem:[%s265 + $0x4] sm:$0x2]
        %v992 = vsel %vm987, %v973, %v991
        %993 = vst [vmem:[%s265 + $0x4] sm:$0x2] %v992
        %v994 = vld [vmem:[%s265 + $0x8] sm:$0x2]
        %v995 = vsel %vm987, %v977, %v994
        %996 = vst [vmem:[%s265 + $0x8] sm:$0x2] %v995
        %v997 = vld [vmem:[%s265 + $0xc] sm:$0x2]
        %v998 = vsel %vm987, %v981, %v997
        %999 = vst [vmem:[%s265 + $0xc] sm:$0x2] %v998
        %v1002 = vunpack.c.l.b16 %v692
        %v1003 = vunpack.c.l.b16 %v693
        %v1004 = vpack.c.b16 %v1003, %v1002
        %v1006 = vsel %vm284, %v1004, 0
        %1008 = vmatpush.bf16.xpose.msra.mxu0 0
        %1009 = vmatpush.bf16.xpose.msra.mxu0 0
        %1010 = vmatpush.bf16.xpose.msra.mxu0 0
        %1011 = vmatpush.bf16.xpose.msra.mxu0 0
        %1012 = vmatpush.bf16.xpose.msra.mxu0 0
        %1013 = vmatpush.bf16.xpose.msra.mxu0 0
        %1014 = vmatpush.bf16.xpose.msra.mxu0 0
        %1015 = vmatpush.bf16.xpose.msra.mxu0 %v1006
        %1016 = vmatmul.bf16.gmra.mxu0 %v707
        %v1017 = vpop.f32.mrf.mxu0
        %v1018 = vadd.f32 0.0, %v1017
        %v1019 = vpop.f32.mrf.mxu0
        %1020 = vdwg.mxu0
        %v1021 = vpack.c.bf16 %v1018, %v1018
        %v1023 = vrot.slane %v1021, 3
        %v1026 = vsel %vm728, %v1021, %v1023
        %v1028 = vsel %vm733, %v1021, %v1023
        %v1030 = vrot.slane %v1028, 1
        %v1031 = vunpack.i.l.s16 %v1026
        %v1032 = vunpack.i.h.s16 %v1026
        %v1033 = vunpack.i.l.s16 %v1030
        %v1034 = vunpack.i.h.s16 %v1030
        %v1035 = vpack.i.b16 %v1031, %v1031
        %v1036 = vpack.i.b16 %v1032, %v1032
        %v1037 = vpack.i.b16 %v1033, %v1033
        %v1038 = vpack.i.b16 %v1034, %v1034
        %v1040 = vunpack.c.l.s4 286326784
        %v1041 = vunpack.c.0.s8 %v1040
        %v1042 = vperm.slane %v1035, %v1041
        %v1044 = vunpack.c.l.s4 286326784
        %v1045 = vunpack.c.0.s8 %v1044
        %v1046 = vperm.slane %v1036, %v1045
        %v1048 = vunpack.c.l.s4 286326784
        %v1049 = vunpack.c.0.s8 %v1048
        %v1050 = vperm.slane %v1037, %v1049
        %v1052 = vunpack.c.l.s4 286326784
        %v1053 = vunpack.c.0.s8 %v1052
        %v1054 = vperm.slane %v1038, %v1053
        %vm1059 = vcmask 124930
        %vm1060 = vsmask.f32 2304
        %vm1061 = vmand %vm1059, %vm1060
        %v1062 = vld [vmem:[%s265] sm:$0x4]
        %v1063 = vsel %vm1061, %v1042, %v1062
        %1064 = vst [vmem:[%s265] sm:$0x4] %v1063
        %v1065 = vld [vmem:[%s265 + $0x4] sm:$0x4]
        %v1066 = vsel %vm1061, %v1046, %v1065
        %1067 = vst [vmem:[%s265 + $0x4] sm:$0x4] %v1066
        %v1068 = vld [vmem:[%s265 + $0x8] sm:$0x4]
        %v1069 = vsel %vm1061, %v1050, %v1068
        %1070 = vst [vmem:[%s265 + $0x8] sm:$0x4] %v1069
        %v1071 = vld [vmem:[%s265 + $0xc] sm:$0x4]
        %v1072 = vsel %vm1061, %v1054, %v1071
        %1073 = vst [vmem:[%s265 + $0xc] sm:$0x4] %v1072
        %v1076 = vunpack.c.l.b16 %v694
        %v1077 = vunpack.c.l.b16 %v695
        %v1078 = vpack.c.b16 %v1077, %v1076
        %v1080 = vsel %vm284, %v1078, 0
        %1082 = vmatpush.bf16.xpose.msra.mxu0 0
        %1083 = vmatpush.bf16.xpose.msra.mxu0 0
        %1084 = vmatpush.bf16.xpose.msra.mxu0 0
        %1085 = vmatpush.bf16.xpose.msra.mxu0 0
        %1086 = vmatpush.bf16.xpose.msra.mxu0 0
        %1087 = vmatpush.bf16.xpose.msra.mxu0 0
        %1088 = vmatpush.bf16.xpose.msra.mxu0 0
        %1089 = vmatpush.bf16.xpose.msra.mxu0 %v1080
        %1090 = vmatmul.bf16.gmra.mxu0 %v707
        %v1091 = vpop.f32.mrf.mxu0
        %v1092 = vadd.f32 0.0, %v1091
        %v1093 = vpop.f32.mrf.mxu0
        %1094 = vdwg.mxu0
        %v1095 = vpack.c.bf16 %v1092, %v1092
        %v1097 = vrot.slane %v1095, 3
        %v1100 = vsel %vm728, %v1095, %v1097
        %v1102 = vsel %vm733, %v1095, %v1097
        %v1104 = vrot.slane %v1102, 1
        %v1105 = vunpack.i.l.s16 %v1100
        %v1106 = vunpack.i.h.s16 %v1100
        %v1107 = vunpack.i.l.s16 %v1104
        %v1108 = vunpack.i.h.s16 %v1104
        %v1109 = vpack.i.b16 %v1105, %v1105
        %v1110 = vpack.i.b16 %v1106, %v1106
        %v1111 = vpack.i.b16 %v1107, %v1107
        %v1112 = vpack.i.b16 %v1108, %v1108
        %v1114 = vunpack.c.l.s4 286326784
        %v1115 = vunpack.c.0.s8 %v1114
        %v1116 = vperm.slane %v1109, %v1115
        %v1118 = vunpack.c.l.s4 286326784
        %v1119 = vunpack.c.0.s8 %v1118
        %v1120 = vperm.slane %v1110, %v1119
        %v1122 = vunpack.c.l.s4 286326784
        %v1123 = vunpack.c.0.s8 %v1122
        %v1124 = vperm.slane %v1111, %v1123
        %v1126 = vunpack.c.l.s4 286326784
        %v1127 = vunpack.c.0.s8 %v1126
        %v1128 = vperm.slane %v1112, %v1127
        %vm1133 = vsmask.f32 7946
        %vm1134 = vmand %vm1059, %vm1133
        %v1135 = vld [vmem:[%s265] sm:$0x4]
        %v1136 = vsel %vm1134, %v1116, %v1135
        %1137 = vst [vmem:[%s265] sm:$0x4] %v1136
        %v1138 = vld [vmem:[%s265 + $0x4] sm:$0x4]
        %v1139 = vsel %vm1134, %v1120, %v1138
        %1140 = vst [vmem:[%s265 + $0x4] sm:$0x4] %v1139
        %v1141 = vld [vmem:[%s265 + $0x8] sm:$0x4]
        %v1142 = vsel %vm1134, %v1124, %v1141
        %1143 = vst [vmem:[%s265 + $0x8] sm:$0x4] %v1142
        %v1144 = vld [vmem:[%s265 + $0xc] sm:$0x4]
        %v1145 = vsel %vm1134, %v1128, %v1144
        %1146 = vst [vmem:[%s265 + $0xc] sm:$0x4] %v1145
        %v1149 = vunpack.c.l.b16 %v696
        %v1150 = vunpack.c.l.b16 %v697
        %v1151 = vpack.c.b16 %v1150, %v1149
        %v1153 = vsel %vm284, %v1151, 0
        %1155 = vmatpush.bf16.xpose.msra.mxu0 0
        %1156 = vmatpush.bf16.xpose.msra.mxu0 0
        %1157 = vmatpush.bf16.xpose.msra.mxu0 0
        %1158 = vmatpush.bf16.xpose.msra.mxu0 0
        %1159 = vmatpush.bf16.xpose.msra.mxu0 0
        %1160 = vmatpush.bf16.xpose.msra.mxu0 0
        %1161 = vmatpush.bf16.xpose.msra.mxu0 0
        %1162 = vmatpush.bf16.xpose.msra.mxu0 %v1153
        %1163 = vmatmul.bf16.gmra.mxu0 %v707
        %v1164 = vpop.f32.mrf.mxu0
        %v1165 = vadd.f32 0.0, %v1164
        %v1166 = vpop.f32.mrf.mxu0
        %1167 = vdwg.mxu0
        %v1168 = vpack.c.bf16 %v1165, %v1165
        %v1170 = vrot.slane %v1168, 3
        %v1173 = vsel %vm728, %v1168, %v1170
        %v1175 = vsel %vm733, %v1168, %v1170
        %v1177 = vrot.slane %v1175, 1
        %v1178 = vunpack.i.l.s16 %v1173
        %v1179 = vunpack.i.h.s16 %v1173
        %v1180 = vunpack.i.l.s16 %v1177
        %v1181 = vunpack.i.h.s16 %v1177
        %v1182 = vpack.i.b16 %v1178, %v1178
        %v1183 = vpack.i.b16 %v1179, %v1179
        %v1184 = vpack.i.b16 %v1180, %v1180
        %v1185 = vpack.i.b16 %v1181, %v1181
        %v1187 = vunpack.c.l.s4 286326784
        %v1188 = vunpack.c.0.s8 %v1187
        %v1189 = vperm.slane %v1182, %v1188
        %v1191 = vunpack.c.l.s4 286326784
        %v1192 = vunpack.c.0.s8 %v1191
        %v1193 = vperm.slane %v1183, %v1192
        %v1195 = vunpack.c.l.s4 286326784
        %v1196 = vunpack.c.0.s8 %v1195
        %v1197 = vperm.slane %v1184, %v1196
        %v1199 = vunpack.c.l.s4 286326784
        %v1200 = vunpack.c.0.s8 %v1199
        %v1201 = vperm.slane %v1185, %v1200
        %vm1206 = vcmask 125955
        %vm1207 = vsmask.f32 3328
        %vm1208 = vmand %vm1206, %vm1207
        %v1209 = vld [vmem:[%s265] sm:$0x8]
        %v1210 = vsel %vm1208, %v1189, %v1209
        %1211 = vst [vmem:[%s265] sm:$0x8] %v1210
        %v1212 = vld [vmem:[%s265 + $0x4] sm:$0x8]
        %v1213 = vsel %vm1208, %v1193, %v1212
        %1214 = vst [vmem:[%s265 + $0x4] sm:$0x8] %v1213
        %v1215 = vld [vmem:[%s265 + $0x8] sm:$0x8]
        %v1216 = vsel %vm1208, %v1197, %v1215
        %1217 = vst [vmem:[%s265 + $0x8] sm:$0x8] %v1216
        %v1218 = vld [vmem:[%s265 + $0xc] sm:$0x8]
        %v1219 = vsel %vm1208, %v1201, %v1218
        %1220 = vst [vmem:[%s265 + $0xc] sm:$0x8] %v1219
        %v1223 = vunpack.c.l.b16 %v698
        %v1224 = vunpack.c.l.b16 %v699
        %v1225 = vpack.c.b16 %v1224, %v1223
        %v1227 = vsel %vm284, %v1225, 0
        %1229 = vmatpush.bf16.xpose.msra.mxu0 0
        %1230 = vmatpush.bf16.xpose.msra.mxu0 0
        %1231 = vmatpush.bf16.xpose.msra.mxu0 0
        %1232 = vmatpush.bf16.xpose.msra.mxu0 0
        %1233 = vmatpush.bf16.xpose.msra.mxu0 0
        %1234 = vmatpush.bf16.xpose.msra.mxu0 0
        %1235 = vmatpush.bf16.xpose.msra.mxu0 0
        %1236 = vmatpush.bf16.xpose.msra.mxu0 %v1227
        %1237 = vmatmul.bf16.gmra.mxu0 %v707
        %v1238 = vpop.f32.mrf.mxu0
        %v1239 = vadd.f32 0.0, %v1238
        %v1240 = vpop.f32.mrf.mxu0
        %1241 = vdwg.mxu0
        %v1242 = vpack.c.bf16 %v1239, %v1239
        %v1244 = vrot.slane %v1242, 3
        %v1247 = vsel %vm728, %v1242, %v1244
        %v1249 = vsel %vm733, %v1242, %v1244
        %v1251 = vrot.slane %v1249, 1
        %v1252 = vunpack.i.l.s16 %v1247
        %v1253 = vunpack.i.h.s16 %v1247
        %v1254 = vunpack.i.l.s16 %v1251
        %v1255 = vunpack.i.h.s16 %v1251
        %v1256 = vpack.i.b16 %v1252, %v1252
        %v1257 = vpack.i.b16 %v1253, %v1253
        %v1258 = vpack.i.b16 %v1254, %v1254
        %v1259 = vpack.i.b16 %v1255, %v1255
        %v1261 = vunpack.c.l.s4 286326784
        %v1262 = vunpack.c.0.s8 %v1261
        %v1263 = vperm.slane %v1256, %v1262
        %v1265 = vunpack.c.l.s4 286326784
        %v1266 = vunpack.c.0.s8 %v1265
        %v1267 = vperm.slane %v1257, %v1266
        %v1269 = vunpack.c.l.s4 286326784
        %v1270 = vunpack.c.0.s8 %v1269
        %v1271 = vperm.slane %v1258, %v1270
        %v1273 = vunpack.c.l.s4 286326784
        %v1274 = vunpack.c.0.s8 %v1273
        %v1275 = vperm.slane %v1259, %v1274
        %vm1280 = vsmask.f32 7950
        %vm1281 = vmand %vm1206, %vm1280
        %v1282 = vld [vmem:[%s265] sm:$0x8]
        %v1283 = vsel %vm1281, %v1263, %v1282
        %1284 = vst [vmem:[%s265] sm:$0x8] %v1283
        %v1285 = vld [vmem:[%s265 + $0x4] sm:$0x8]
        %v1286 = vsel %vm1281, %v1267, %v1285
        %1287 = vst [vmem:[%s265 + $0x4] sm:$0x8] %v1286
        %v1288 = vld [vmem:[%s265 + $0x8] sm:$0x8]
        %v1289 = vsel %vm1281, %v1271, %v1288
        %1290 = vst [vmem:[%s265 + $0x8] sm:$0x8] %v1289
        %v1291 = vld [vmem:[%s265 + $0xc] sm:$0x8]
        %v1292 = vsel %vm1281, %v1275, %v1291
        %1293 = vst [vmem:[%s265 + $0xc] sm:$0x8] %v1292
        %s1294 = sand.u32 %s135, 1
        %s1295 = scalar_lea.sflag [#allocation4], %s1294
        %s1296 = sand.u32 %s135, 1
        %s1297 = smul.addr %s1296, 16
        %s1298 = scalar_lea.vmem [#allocation8], %s1297
        // Predicated region
        $region49: #{tpu_custom_call.1} parent=35 // pred_check
          %p1299 = pneg %p145
        $region50: #{tpu_custom_call.1} parent=35 // pred_check_branch
          %1301 = sbr.rel (%p1299) target = $region52
        $region51: #{tpu_custom_call.1} parent=35 // pred_region
          %1303 = vsyncadd %s1295, 0
          %s1304 = smul.addr %s26, 8
          %s1305 = sadd.s32 %s27, %s1304
          %s1306 = smul.addr %s1305, 4
          %s1307 = scalar_lea.hbm %s4, %s1306
          %s1308 = sshll.u32 %s1298, 4
          %s1309 = int_to_ptr.vmem [resolvable:$true] %s1308
          %s1310 = sshll.u32 %s1307, 4
          %s1311 = int_to_ptr.hbm [resolvable:$true] %s1310
          %1316 = dma.vmem_to_hbm [thread:$0]  %s1309, 256, %s1311, %s1295, 64, 128, 4
        $region52: #{tpu_custom_call.1} parent=35 // pred_fallthru
          _
      $region36: #{tpu_custom_call.1} parent=5 // pred_fallthru
        _
      %p1317 = scmp.le.s32.totalorder 2, %s17
      // Predicated region
      $region53: #{tpu_custom_call.1} parent=5 // pred_check
        %p1318 = pneg %p1317
      $region54: #{tpu_custom_call.1} parent=5 // pred_check_branch
        %1320 = sbr.rel (%p1318) target = $region56
      $region55: #{tpu_custom_call.1} parent=5 // pred_region
        %s1321 = ssub.s32 %s17, 2
        // Predicated region
        $region57: #{tpu_custom_call.1} parent=55 // pred_check
          %p1322 = pneg %p151
        $region58: #{tpu_custom_call.1} parent=55 // pred_check_branch
          %1324 = sbr.rel (%p1322) target = $region60
        $region59: #{tpu_custom_call.1} parent=55 // pred_region
          %s1325 = sand.u32 %s136, 1
          %s1326 = scalar_lea.sflag [#allocation4], %s1325
          %s1327 = sand.u32 %s136, 1
          %s1328 = smul.addr %s1327, 16
          %s1329 = scalar_lea.vmem [#allocation8], %s1328
          %1331 = dma.done %s1326, 256
        $region60: #{tpu_custom_call.1} parent=55 // pred_fallthru
          _
      $region56: #{tpu_custom_call.1} parent=5 // pred_fallthru
        _
    $region6: #{tpu_custom_call.1} parent=1 // loop_footer
      %s21 = sadd.s32 1, %s17
    $region7: #{tpu_custom_call.1} parent=1 // loop_footer_branch
      %16 = sbr.rel target = $region3
    $region8: #{tpu_custom_call.1} parent=1 // loop_exit
      _
    %1332 = vsyncpa [#allocation3], 1
    %s1333 = scalar_lea.sflag [#allocation3], 1
    %1334 = vsyncpa %s1333, 1
    %1335 = vsyncpa [#allocation6], 1
    %1336 = vsyncpa [#allocation4], 1
    %s1337 = scalar_lea.sflag [#allocation4], 1
    %1338 = vsyncpa %s1337, 1

</llo_original>
